<compile_context>
chip_gen: v5e
topology: v5e:2x2
jax: 0.10.0
libtpu: 0.0.40
codegen_flags: <defaults>
</compile_context>

<pallas_src>
import jax
import jax.numpy as jnp
from jax import lax
from jax.experimental import pallas as pl
from jax.experimental.pallas import tpu as pltpu


def _pad_hw(x):
    """(H, W, C) -> (H+2, W+2, C), zero 1-pixel border on the two spatial dims."""
    H, W, C = x.shape
    zrow = jnp.zeros((1, W, C), x.dtype)
    x = jnp.concatenate([zrow, x, zrow], axis=0)            # (H+2, W, C)
    zcol = jnp.zeros((H + 2, 1, C), x.dtype)
    return jnp.concatenate([zcol, x, zcol], axis=1)          # (H+2, W+2, C)


def _im2col_3x3(xp, H, W):
    """xp: (H+2, W+2, C) zero-padded -> (H*W, 9*C) patches.

    Last-axis ordering is (dy, dx, c)-major, matching the OIHW ->
    (kh, kw, Cin, Cout) -> (9*Cin, Cout) weight reshape done in the wrapper.
    Only lane-axis concats, leading-dim slices and a leading-dim merge reshape.
    """
    xw = jnp.concatenate([xp[:, dx:dx + W, :] for dx in range(3)], axis=-1)   # (H+2, W, 3C)
    p = jnp.concatenate([xw[dy:dy + H] for dy in range(3)], axis=-1)          # (H, W, 9C)
    return p.reshape(H * W, p.shape[-1])


def _conv_block_kernel(x_ref, w1_ref, t1_ref, w2t_ref, t2_ref, o_ref):
    """Per-batch-element fused conv-bn-relu-conv-bn-relu.

    x_ref  : (1, H, W, Cin)   unpadded NHWC input tile (bf16)
    w1_ref : (9*Cin, Cout)    conv1 weights, BN scale folded in (bf16)
    t1_ref : (1, Cout)        conv1 folded shift = beta + (bias - mean) * scale (f32)
    w2t_ref: (Cout, 9*Cout)   conv2 weights, BN scale folded, pre-transposed (bf16)
    t2_ref : (Cout, 1)        conv2 folded shift (f32)
    o_ref  : (1, Cout, H*W)   output tile (f32), lane-dense (last dim = H*W)
    """
    H = x_ref.shape[1]
    W = x_ref.shape[2]
    cout = w1_ref.shape[1]

    # ---- conv1 (+ folded bias/BN) + ReLU: one im2col MXU matmul, K = 9*Cin ----
    xp = _pad_hw(x_ref[0])                                   # (H+2, W+2, Cin) bf16
    p1 = _im2col_3x3(xp, H, W)                               # (H*W, 9*Cin)   bf16
    y = jnp.dot(p1, w1_ref[...], preferred_element_type=jnp.float32)  # (H*W, Cout) f32
    y = jnp.maximum(y + t1_ref[0], 0.0)
    y = y.reshape(H, W, cout).astype(jnp.bfloat16)           # (H, W, Cout) bf16 value

    # ---- conv2 (+ folded bias/BN) + ReLU, computed transposed for lane-dense out ----
    yp = _pad_hw(y)                                          # (H+2, W+2, Cout) bf16
    p2 = _im2col_3x3(yp, H, W)                               # (H*W, 9*Cout)    bf16
    # (Cout, 9*Cout) x (H*W, 9*Cout) contracting last dims -> (Cout, H*W)
    y2t = lax.dot_general(
        w2t_ref[...], p2,
        dimension_numbers=(((1,), (1,)), ((), ())),
        preferred_element_type=jnp.float32)
    o_ref[0] = jnp.maximum(y2t + t2_ref[...], 0.0).astype(o_ref.dtype)


def conv_block_pallas(x_nchw, params, eps=1e-5):
    """Pallas forward pass.  x_nchw: (B, Cin, H, W) float32 -> (B, Cout, H, W)."""
    (w1, b1, g1, be1, m1, v1, w2, b2, g2, be2, m2, v2) = params
    B, Cin, H, W = x_nchw.shape
    Cout = w1.shape[0]

    # NCHW -> NHWC fused with bf16 cast (single wrapper pass; pad happens in-kernel).
    x_nhwc = jnp.transpose(x_nchw, (0, 2, 3, 1)).astype(jnp.bfloat16)

    # Fold conv bias + inference BN into the weights and a single shift:
    #   y = relu( conv(x, w * s) + (beta + (bias - mean) * s) ),  s = gamma/sqrt(var+eps)
    s1 = g1 / jnp.sqrt(v1 + eps)
    t1 = be1 + (b1 - m1) * s1
    s2 = g2 / jnp.sqrt(v2 + eps)
    t2 = be2 + (b2 - m2) * s2

    # OIHW -> (kh, kw, Cin, Cout) -> (9*Cin, Cout), scale folded in, bf16 for MXU.
    w1_t = (jnp.transpose(w1, (2, 3, 1, 0)).reshape(9 * Cin, Cout)
            * s1[None, :]).astype(jnp.bfloat16)
    # conv2 weights additionally pre-transposed to (Cout, 9*Cout) for the NT matmul.
    w2_tt = ((jnp.transpose(w2, (2, 3, 1, 0)).reshape(9 * Cout, Cout)
              * s2[None, :]).astype(jnp.bfloat16)).T

    t1_r = t1.reshape(1, Cout).astype(jnp.float32)
    t2_r = t2.reshape(Cout, 1).astype(jnp.float32)

    out_flat = pl.pallas_call(
        _conv_block_kernel,
        out_shape=jax.ShapeDtypeStruct((B, Cout, H * W), jnp.float32),
        grid=(B,),
        in_specs=[
            pl.BlockSpec((1, H, W, Cin), lambda b: (b, 0, 0, 0)),
            # Weight / shift operands are grid-invariant (constant index_map),
            # so they are only DMA'd once across the whole grid.
            pl.BlockSpec((9 * Cin, Cout), lambda b: (0, 0)),
            pl.BlockSpec((1, Cout), lambda b: (0, 0)),
            pl.BlockSpec((Cout, 9 * Cout), lambda b: (0, 0)),
            pl.BlockSpec((Cout, 1), lambda b: (0, 0)),
        ],
        out_specs=pl.BlockSpec((1, Cout, H * W), lambda b: (b, 0, 0)),
        compiler_params=pltpu.CompilerParams(
            dimension_semantics=("parallel",)),
    )(x_nhwc, w1_t, t1_r, w2_tt, t2_r)

    # (B, Cout, H*W) is flattened NCHW already -> free reshape, no transpose pass.
    return out_flat.reshape(B, Cout, H, W)


def conv_block_reference(x, params, eps=1e-5):
    """Plain-JAX reference (NCHW, matches PyTorch eval-mode semantics)."""
    (w1, b1, g1, be1, m1, v1, w2, b2, g2, be2, m2, v2) = params

    def conv(x, w, b):
        y = lax.conv_general_dilated(
            x, w, window_strides=(1, 1), padding=((1, 1), (1, 1)),
            dimension_numbers=("NCHW", "OIHW", "NCHW"))
        return y + b[None, :, None, None]

    def bn(x, g, be, m, v):
        return ((x - m[None, :, None, None])
                / jnp.sqrt(v[None, :, None, None] + eps)
                * g[None, :, None, None] + be[None, :, None, None])

    y = jax.nn.relu(bn(conv(x, w1, b1), g1, be1, m1, v1))
    y = jax.nn.relu(bn(conv(y, w2, b2), g2, be2, m2, v2))
    return y


if __name__ == "__main__":
    B, Cin, Cout, H, W = 2, 4, 8, 16, 16

    keys = jax.random.split(jax.random.PRNGKey(0), 13)

    # Deterministic synthetic parameters (shapes match nn.Conv2d / nn.BatchNorm2d)
    w1 = 0.1 * jax.random.normal(keys[0], (Cout, Cin, 3, 3), jnp.float32)
    b1 = 0.05 * jax.random.normal(keys[1], (Cout,), jnp.float32)
    g1 = 1.0 + 0.1 * jax.random.normal(keys[2], (Cout,), jnp.float32)
    be1 = 0.1 * jax.random.normal(keys[3], (Cout,), jnp.float32)
    m1 = 0.1 * jax.random.normal(keys[4], (Cout,), jnp.float32)
    v1 = 1.0 + 0.1 * jax.nn.softplus(jax.random.normal(keys[5], (Cout,), jnp.float32))

    w2 = 0.1 * jax.random.normal(keys[6], (Cout, Cout, 3, 3), jnp.float32)
    b2 = 0.05 * jax.random.normal(keys[7], (Cout,), jnp.float32)
    g2 = 1.0 + 0.1 * jax.random.normal(keys[8], (Cout,), jnp.float32)
    be2 = 0.1 * jax.random.normal(keys[9], (Cout,), jnp.float32)
    m2 = 0.1 * jax.random.normal(keys[10], (Cout,), jnp.float32)
    v2 = 1.0 + 0.1 * jax.nn.softplus(jax.random.normal(keys[11], (Cout,), jnp.float32))

    params = (w1, b1, g1, be1, m1, v1, w2, b2, g2, be2, m2, v2)

    x = jax.random.normal(keys[12], (B, Cin, H, W), jnp.float32)

    out = jax.block_until_ready(conv_block_pallas(x, params))
    ref = jax.block_until_ready(conv_block_reference(x, params))

    assert out.shape == (B, Cout, H, W), out.shape
    # bf16 MXU operands / bf16 intermediate (f32 accumulation) -> loosened tolerance.
    assert jnp.allclose(out, ref, rtol=5e-2, atol=5e-2), (
        float(jnp.max(jnp.abs(out - ref))))

    print("KERNEL_OK")
</pallas_src>

<mosaic_0001>
module attributes {stable_mosaic.version = 11 : i64} {
  func.func @_conv_block_kernel(%arg0: i32, %arg1: memref<1x16x16x4xbf16, #tpu.memory_space<vmem>>, %arg2: memref<36x8xbf16, #tpu.memory_space<vmem>>, %arg3: memref<1x8xf32, #tpu.memory_space<vmem>>, %arg4: memref<8x72xbf16, #tpu.memory_space<vmem>>, %arg5: memref<8x1xf32, #tpu.memory_space<vmem>>, %arg6: memref<1x8x256xf32, #tpu.memory_space<vmem>>) attributes {dimension_semantics = [#tpu.dimension_semantics<parallel>], iteration_bounds = array<i64: 2>, scalar_prefetch = 0 : i64, scratch_operands = 0 : i64, tpu.core_type = #tpu.core_type<tc>, window_params = [{transform_indices = @transform_0, window_bounds = array<i64: 1, 16, 16, 4>}, {pipeline_mode = #tpu.pipeline_mode<synchronous>, transform_indices = @transform_1, window_bounds = array<i64: 36, 8>}, {pipeline_mode = #tpu.pipeline_mode<synchronous>, transform_indices = @transform_2, window_bounds = array<i64: 1, 8>}, {pipeline_mode = #tpu.pipeline_mode<synchronous>, transform_indices = @transform_3, window_bounds = array<i64: 8, 72>}, {pipeline_mode = #tpu.pipeline_mode<synchronous>, transform_indices = @transform_4, window_bounds = array<i64: 8, 1>}, {transform_indices = @transform_5, window_bounds = array<i64: 1, 8, 256>}]} {
    %c0 = arith.constant 0 : index
    %c0_0 = arith.constant 0 : index
    %c0_1 = arith.constant 0 : index
    %c0_2 = arith.constant 0 : index
    %0 = vector.load %arg1[%c0, %c0_0, %c0_1, %c0_2] : memref<1x16x16x4xbf16, #tpu.memory_space<vmem>>, vector<1x16x16x4xbf16>
    %1 = vector.shape_cast %0 : vector<1x16x16x4xbf16> to vector<16x16x4xbf16>
    %cst = arith.constant 0.000000e+00 : bf16
    %2 = vector.broadcast %cst : bf16 to vector<1x16x4xbf16>
    %3 = tpu.concatenate %2, %1, %2 in 0 : vector<1x16x4xbf16>, vector<16x16x4xbf16>, vector<1x16x4xbf16> -> vector<18x16x4xbf16>
    %cst_3 = arith.constant 0.000000e+00 : bf16
    %4 = vector.broadcast %cst_3 : bf16 to vector<18x1x4xbf16>
    %5 = tpu.concatenate %4, %3, %4 in 1 : vector<18x1x4xbf16>, vector<18x16x4xbf16>, vector<18x1x4xbf16> -> vector<18x18x4xbf16>
    %6 = vector.extract_strided_slice %5 {offsets = [0, 0, 0], sizes = [18, 16, 4], strides = [1, 1, 1]} : vector<18x18x4xbf16> to vector<18x16x4xbf16>
    %7 = vector.extract_strided_slice %5 {offsets = [0, 1, 0], sizes = [18, 16, 4], strides = [1, 1, 1]} : vector<18x18x4xbf16> to vector<18x16x4xbf16>
    %8 = vector.extract_strided_slice %5 {offsets = [0, 2, 0], sizes = [18, 16, 4], strides = [1, 1, 1]} : vector<18x18x4xbf16> to vector<18x16x4xbf16>
    %9 = tpu.concatenate %6, %7, %8 in 2 : vector<18x16x4xbf16>, vector<18x16x4xbf16>, vector<18x16x4xbf16> -> vector<18x16x12xbf16>
    %10 = vector.extract_strided_slice %9 {offsets = [0, 0, 0], sizes = [16, 16, 12], strides = [1, 1, 1]} : vector<18x16x12xbf16> to vector<16x16x12xbf16>
    %11 = vector.extract_strided_slice %9 {offsets = [1, 0, 0], sizes = [16, 16, 12], strides = [1, 1, 1]} : vector<18x16x12xbf16> to vector<16x16x12xbf16>
    %12 = vector.extract_strided_slice %9 {offsets = [2, 0, 0], sizes = [16, 16, 12], strides = [1, 1, 1]} : vector<18x16x12xbf16> to vector<16x16x12xbf16>
    %13 = tpu.concatenate %10, %11, %12 in 2 : vector<16x16x12xbf16>, vector<16x16x12xbf16>, vector<16x16x12xbf16> -> vector<16x16x36xbf16>
    %14 = vector.shape_cast %13 : vector<16x16x36xbf16> to vector<256x36xbf16>
    %c0_4 = arith.constant 0 : index
    %c0_5 = arith.constant 0 : index
    %15 = vector.load %arg2[%c0_4, %c0_5] : memref<36x8xbf16, #tpu.memory_space<vmem>>, vector<36x8xbf16>
    %cst_6 = arith.constant dense<0.000000e+00> : vector<256x8xf32>
    %16 = tpu.matmul %14, %15, %cst_6 {dimension_numbers = #tpu.dot_dimension_numbers<[1], [0], [0], [1], [0, 0, 1, 1], [], []>} : vector<256x36xbf16>, vector<36x8xbf16>, vector<256x8xf32> -> vector<256x8xf32>
    %c0_7 = arith.constant 0 : index
    %c0_8 = arith.constant 0 : index
    %17 = vector.load %arg3[%c0_7, %c0_8] : memref<1x8xf32, #tpu.memory_space<vmem>>, vector<1x8xf32>
    %18 = vector.shape_cast %17 : vector<1x8xf32> to vector<8xf32>
    %19 = vector.shape_cast %18 : vector<8xf32> to vector<1x8xf32>
    %20 = vector.broadcast %19 : vector<1x8xf32> to vector<256x8xf32>
    %21 = arith.addf %16, %20 : vector<256x8xf32>
    %cst_9 = arith.constant 0.000000e+00 : f32
    %22 = vector.broadcast %cst_9 : f32 to vector<256x8xf32>
    %23 = arith.maximumf %21, %22 : vector<256x8xf32>
    %24 = vector.shape_cast %23 : vector<256x8xf32> to vector<16x16x8xf32>
    %25 = arith.truncf %24 : vector<16x16x8xf32> to vector<16x16x8xbf16>
    %cst_10 = arith.constant 0.000000e+00 : bf16
    %26 = vector.broadcast %cst_10 : bf16 to vector<1x16x8xbf16>
    %27 = tpu.concatenate %26, %25, %26 in 0 : vector<1x16x8xbf16>, vector<16x16x8xbf16>, vector<1x16x8xbf16> -> vector<18x16x8xbf16>
    %cst_11 = arith.constant 0.000000e+00 : bf16
    %28 = vector.broadcast %cst_11 : bf16 to vector<18x1x8xbf16>
    %29 = tpu.concatenate %28, %27, %28 in 1 : vector<18x1x8xbf16>, vector<18x16x8xbf16>, vector<18x1x8xbf16> -> vector<18x18x8xbf16>
    %30 = vector.extract_strided_slice %29 {offsets = [0, 0, 0], sizes = [18, 16, 8], strides = [1, 1, 1]} : vector<18x18x8xbf16> to vector<18x16x8xbf16>
    %31 = vector.extract_strided_slice %29 {offsets = [0, 1, 0], sizes = [18, 16, 8], strides = [1, 1, 1]} : vector<18x18x8xbf16> to vector<18x16x8xbf16>
    %32 = vector.extract_strided_slice %29 {offsets = [0, 2, 0], sizes = [18, 16, 8], strides = [1, 1, 1]} : vector<18x18x8xbf16> to vector<18x16x8xbf16>
    %33 = tpu.concatenate %30, %31, %32 in 2 : vector<18x16x8xbf16>, vector<18x16x8xbf16>, vector<18x16x8xbf16> -> vector<18x16x24xbf16>
    %34 = vector.extract_strided_slice %33 {offsets = [0, 0, 0], sizes = [16, 16, 24], strides = [1, 1, 1]} : vector<18x16x24xbf16> to vector<16x16x24xbf16>
    %35 = vector.extract_strided_slice %33 {offsets = [1, 0, 0], sizes = [16, 16, 24], strides = [1, 1, 1]} : vector<18x16x24xbf16> to vector<16x16x24xbf16>
    %36 = vector.extract_strided_slice %33 {offsets = [2, 0, 0], sizes = [16, 16, 24], strides = [1, 1, 1]} : vector<18x16x24xbf16> to vector<16x16x24xbf16>
    %37 = tpu.concatenate %34, %35, %36 in 2 : vector<16x16x24xbf16>, vector<16x16x24xbf16>, vector<16x16x24xbf16> -> vector<16x16x72xbf16>
    %38 = vector.shape_cast %37 : vector<16x16x72xbf16> to vector<256x72xbf16>
    %c0_12 = arith.constant 0 : index
    %c0_13 = arith.constant 0 : index
    %39 = vector.load %arg4[%c0_12, %c0_13] : memref<8x72xbf16, #tpu.memory_space<vmem>>, vector<8x72xbf16>
    %cst_14 = arith.constant dense<0.000000e+00> : vector<8x256xf32>
    %40 = tpu.matmul %39, %38, %cst_14 {dimension_numbers = #tpu.dot_dimension_numbers<[1], [1], [0], [0], [0, 0, 1, 0], [], []>} : vector<8x72xbf16>, vector<256x72xbf16>, vector<8x256xf32> -> vector<8x256xf32>
    %c0_15 = arith.constant 0 : index
    %c0_16 = arith.constant 0 : index
    %41 = vector.load %arg5[%c0_15, %c0_16] : memref<8x1xf32, #tpu.memory_space<vmem>>, vector<8x1xf32>
    %42 = vector.broadcast %41 : vector<8x1xf32> to vector<8x256xf32>
    %43 = arith.addf %40, %42 : vector<8x256xf32>
    %cst_17 = arith.constant 0.000000e+00 : f32
    %44 = vector.broadcast %cst_17 : f32 to vector<8x256xf32>
    %45 = arith.maximumf %43, %44 : vector<8x256xf32>
    %c0_18 = arith.constant 0 : index
    %c0_19 = arith.constant 0 : index
    %c0_20 = arith.constant 0 : index
    %46 = vector.load %arg6[%c0_18, %c0_19, %c0_20] : memref<1x8x256xf32, #tpu.memory_space<vmem>>, vector<1x8x256xf32>
    %47 = vector.shape_cast %46 : vector<1x8x256xf32> to vector<8x256xf32>
    %48 = vector.shape_cast %45 : vector<8x256xf32> to vector<1x8x256xf32>
    tpu.vector_store %arg6[%c0_18, %c0_19, %c0_20], %48 {strides = array<i32>} : memref<1x8x256xf32, #tpu.memory_space<vmem>>, vector<1x8x256xf32>,
    return
  }
  func.func @transform_0(%arg0: i32) -> (i32, i32, i32, i32) {
    %c0_i32 = arith.constant 0 : i32
    %c0_i32_0 = arith.constant 0 : i32
    %c0_i32_1 = arith.constant 0 : i32
    %c0_i32_2 = arith.constant 0 : i32
    return %arg0, %c0_i32, %c0_i32_0, %c0_i32_1 : i32, i32, i32, i32
  }
  func.func @transform_1(%arg0: i32) -> (i32, i32) {
    %c0_i32 = arith.constant 0 : i32
    %c0_i32_0 = arith.constant 0 : i32
    %c0_i32_1 = arith.constant 0 : i32
    return %c0_i32, %c0_i32_0 : i32, i32
  }
  func.func @transform_2(%arg0: i32) -> (i32, i32) {
    %c0_i32 = arith.constant 0 : i32
    %c0_i32_0 = arith.constant 0 : i32
    %c0_i32_1 = arith.constant 0 : i32
    return %c0_i32, %c0_i32_0 : i32, i32
  }
  func.func @transform_3(%arg0: i32) -> (i32, i32) {
    %c0_i32 = arith.constant 0 : i32
    %c0_i32_0 = arith.constant 0 : i32
    %c0_i32_1 = arith.constant 0 : i32
    return %c0_i32, %c0_i32_0 : i32, i32
  }
  func.func @transform_4(%arg0: i32) -> (i32, i32) {
    %c0_i32 = arith.constant 0 : i32
    %c0_i32_0 = arith.constant 0 : i32
    %c0_i32_1 = arith.constant 0 : i32
    return %c0_i32, %c0_i32_0 : i32, i32
  }
  func.func @transform_5(%arg0: i32) -> (i32, i32, i32) {
    %c0_i32 = arith.constant 0 : i32
    %c0_i32_0 = arith.constant 0 : i32
    %c0_i32_1 = arith.constant 0 : i32
    return %arg0, %c0_i32, %c0_i32_0 : i32, i32, i32
  }
}

</mosaic_0001>

<llo_original>
// kernel: tpu_custom_call.1
$region0: #{tpu_custom_call.1}
  #allocation0 [shape = 'u32[]', space=smem, size = 0x4, offset = 0x4, fixed_abs, tag = 'smem constant byte address 0x4 - core index']
  #allocation1 [shape = 'u32[72,128]{1,0:T(1,128)}', space=vmem, size = 0x9000, scoped, tag = 'internal scratch']
  %s0 = inlined_call_operand.vmem [shape: bf16[2,16,16,4], index: 0, kind: input, shape index: {}]
  %s1 = inlined_call_operand.vmem [shape: bf16[36,8], index: 1, kind: input, shape index: {}]
  %s2 = inlined_call_operand.vmem [shape: f32[1,8], index: 2, kind: input, shape index: {}]
  %s3 = inlined_call_operand.vmem [shape: bf16[8,72], index: 3, kind: input, shape index: {}]
  %s4 = inlined_call_operand.vmem [shape: f32[8,1], index: 4, kind: input, shape index: {}]
  %s5 = inlined_call_operand.hbm [shape: f32[2,8,256], index: 5, kind: output, shape index: {}]
  %s6 = sld [smem:[#allocation0]]
  $region53: #{tpu_custom_call.1} parent=0
    _
  %s8 = ssub.s32 1, %s6
  %s9 = scalar_select 0, %s8, %s6
  $region1: #{tpu_custom_call.1} parent=0
    #allocation2 [shape = 'u8[16384]{0}', space=vmem, size = 0x4000, scoped, tag = 'output window, operand 0']
    #allocation3 [shape = 's32[2]{0}', space=sflag, size = 0x8, scoped, tag = 'scoped memory for tpu_custom_call.1']
    %10 = vsyncpa [#allocation3], 0
    %s11 = scalar_lea.sflag [#allocation3], 1
    %12 = vsyncpa %s11, 0
    loop: start=0, step=1, limit=4
    $region2: #{tpu_custom_call.1} parent=1 // loop_pre_header
      _
    $region3: #{tpu_custom_call.1} parent=1 // loop_header
      %s14 = sphi 0, %s18
      %p15 = scmp.ge.s32.totalorder %s14, 4
      %s24 = sphi 0, %s26
      %s27 = sphi 0, %s24
      %s28 = sphi 0, %s27
      %s44 = sphi 0, %s28
      %s48 = sphi 0, %s48
      %s50 = sphi 0, %s48
      %s51 = sphi 0, %s50
      %s65 = sphi 0, %s51
      %s69 = sphi 0, %s69
      %s71 = sphi 0, %s69
      %s72 = sphi 0, %s71
      %s86 = sphi 0, %s72
      %s90 = sphi 0, %s90
      %s92 = sphi 0, %s90
      %s93 = sphi 0, %s92
      %s107 = sphi 0, %s93
      %s111 = sphi 0, %s111
      %s113 = sphi 0, %s111
      %s114 = sphi 0, %s113
      %s128 = sphi 0, %s114
      %s134 = sphi 0, %s136
      %s137 = sphi 0, %s134
      %s138 = sphi 0, %s137
      %s154 = sphi 0, %s138
    $region4: #{tpu_custom_call.1} parent=1 // loop_header_branch
      %17 = sbr.rel (%p15) target = $region8
    $region5: #{tpu_custom_call.1} parent=1 // loop_body
      %s19 = ssub.s32 %s14, 1
      %s20 = ssub.s32 %s14, 2
      %s21 = sadd.s32 %s14, 1
      %s22 = ssub.s32 %s14, %s21
      %p23 = scmp.eq.s32.totalorder %s22, 0
      %s25 = sadd.s32 %s24, 1
      %s26 = scalar_select %p23, %s24, %s25
      %p29 = pneg %p23
      %p30 = scmp.eq.s32.totalorder %s14, 1
      %p31 = por %p29, %p30
      %p32 = scmp.ne.s32.totalorder %s24, %s27
      %p33 = scmp.eq.s32.totalorder %s14, 0
      %p34 = por %p32, %p33
      %p35 = scmp.ne.s32.totalorder %s24, %s27
      %p36 = scmp.eq.s32.totalorder %s19, 1
      %p37 = por %p35, %p36
      %p38 = scmp.ne.s32.totalorder %s27, %s28
      %p39 = scmp.eq.s32.totalorder %s19, 0
      %p40 = por %p38, %p39
      %p41 = scmp.ne.s32.totalorder %s27, %s28
      %p42 = scmp.eq.s32.totalorder %s20, 1
      %p43 = por %p41, %p42
      %p45 = scmp.ne.s32.totalorder %s28, %s44
      %p46 = scmp.eq.s32.totalorder %s20, 0
      %p47 = por %p45, %p46
      %s49 = sadd.s32 %s48, 1
      %p52 = scmp.eq.s32.totalorder %s14, 1
      %p53 = scmp.ne.s32.totalorder %s48, %s50
      %p54 = scmp.eq.s32.totalorder %s14, 0
      %p55 = por %p53, %p54
      %p56 = scmp.ne.s32.totalorder %s48, %s50
      %p57 = scmp.eq.s32.totalorder %s19, 1
      %p58 = por %p56, %p57
      %p59 = scmp.ne.s32.totalorder %s50, %s51
      %p60 = scmp.eq.s32.totalorder %s19, 0
      %p61 = por %p59, %p60
      %p62 = scmp.ne.s32.totalorder %s50, %s51
      %p63 = scmp.eq.s32.totalorder %s20, 1
      %p64 = por %p62, %p63
      %p66 = scmp.ne.s32.totalorder %s51, %s65
      %p67 = scmp.eq.s32.totalorder %s20, 0
      %p68 = por %p66, %p67
      %s70 = sadd.s32 %s69, 1
      %p73 = scmp.eq.s32.totalorder %s14, 1
      %p74 = scmp.ne.s32.totalorder %s69, %s71
      %p75 = scmp.eq.s32.totalorder %s14, 0
      %p76 = por %p74, %p75
      %p77 = scmp.ne.s32.totalorder %s69, %s71
      %p78 = scmp.eq.s32.totalorder %s19, 1
      %p79 = por %p77, %p78
      %p80 = scmp.ne.s32.totalorder %s71, %s72
      %p81 = scmp.eq.s32.totalorder %s19, 0
      %p82 = por %p80, %p81
      %p83 = scmp.ne.s32.totalorder %s71, %s72
      %p84 = scmp.eq.s32.totalorder %s20, 1
      %p85 = por %p83, %p84
      %p87 = scmp.ne.s32.totalorder %s72, %s86
      %p88 = scmp.eq.s32.totalorder %s20, 0
      %p89 = por %p87, %p88
      %s91 = sadd.s32 %s90, 1
      %p94 = scmp.eq.s32.totalorder %s14, 1
      %p95 = scmp.ne.s32.totalorder %s90, %s92
      %p96 = scmp.eq.s32.totalorder %s14, 0
      %p97 = por %p95, %p96
      %p98 = scmp.ne.s32.totalorder %s90, %s92
      %p99 = scmp.eq.s32.totalorder %s19, 1
      %p100 = por %p98, %p99
      %p101 = scmp.ne.s32.totalorder %s92, %s93
      %p102 = scmp.eq.s32.totalorder %s19, 0
      %p103 = por %p101, %p102
      %p104 = scmp.ne.s32.totalorder %s92, %s93
      %p105 = scmp.eq.s32.totalorder %s20, 1
      %p106 = por %p104, %p105
      %p108 = scmp.ne.s32.totalorder %s93, %s107
      %p109 = scmp.eq.s32.totalorder %s20, 0
      %p110 = por %p108, %p109
      %s112 = sadd.s32 %s111, 1
      %p115 = scmp.eq.s32.totalorder %s14, 1
      %p116 = scmp.ne.s32.totalorder %s111, %s113
      %p117 = scmp.eq.s32.totalorder %s14, 0
      %p118 = por %p116, %p117
      %p119 = scmp.ne.s32.totalorder %s111, %s113
      %p120 = scmp.eq.s32.totalorder %s19, 1
      %p121 = por %p119, %p120
      %p122 = scmp.ne.s32.totalorder %s113, %s114
      %p123 = scmp.eq.s32.totalorder %s19, 0
      %p124 = por %p122, %p123
      %p125 = scmp.ne.s32.totalorder %s113, %s114
      %p126 = scmp.eq.s32.totalorder %s20, 1
      %p127 = por %p125, %p126
      %p129 = scmp.ne.s32.totalorder %s114, %s128
      %p130 = scmp.eq.s32.totalorder %s20, 0
      %p131 = por %p129, %p130
      %s132 = ssub.s32 %s14, %s21
      %p133 = scmp.eq.s32.totalorder %s132, 0
      %s135 = sadd.s32 %s134, 1
      %s136 = scalar_select %p133, %s134, %s135
      %p139 = pneg %p133
      %p140 = scmp.eq.s32.totalorder %s14, 1
      %p141 = por %p139, %p140
      %p142 = scmp.ne.s32.totalorder %s134, %s137
      %p143 = scmp.eq.s32.totalorder %s14, 0
      %p144 = por %p142, %p143
      %p145 = scmp.ne.s32.totalorder %s134, %s137
      %p146 = scmp.eq.s32.totalorder %s19, 1
      %p147 = por %p145, %p146
      %p148 = scmp.ne.s32.totalorder %s137, %s138
      %p149 = scmp.eq.s32.totalorder %s19, 0
      %p150 = por %p148, %p149
      %p151 = scmp.ne.s32.totalorder %s137, %s138
      %p152 = scmp.eq.s32.totalorder %s20, 1
      %p153 = por %p151, %p152
      %p155 = scmp.ne.s32.totalorder %s138, %s154
      %p156 = scmp.eq.s32.totalorder %s20, 0
      %p157 = por %p155, %p156
      %p158 = scmp.le.s32.totalorder 1, %s14
      %p159 = scmp.lt.s32.totalorder %s14, 3
      %p160 = pnand %p158, %p159
      %p161 = pneg %p160
      // Predicated region
      $region9: #{tpu_custom_call.1} parent=5 // pred_check
        _
      $region10: #{tpu_custom_call.1} parent=5 // pred_check_branch
        %163 = sbr.rel (%p160) target = $region12
      $region11: #{tpu_custom_call.1} parent=5 // pred_region
        %s164 = ssub.s32 %s14, 1
        // Predicated region
        $region13: #{tpu_custom_call.1} parent=11 // pred_check
          %p165 = pneg %p61
        $region14: #{tpu_custom_call.1} parent=11 // pred_check_branch
          %167 = sbr.rel (%p165) target = $region16
        $region15: #{tpu_custom_call.1} parent=11 // pred_region
          _
        $region16: #{tpu_custom_call.1} parent=11 // pred_fallthru
          _
        // Predicated region
        $region17: #{tpu_custom_call.1} parent=11 // pred_check
          %p168 = pneg %p82
        $region18: #{tpu_custom_call.1} parent=11 // pred_check_branch
          %170 = sbr.rel (%p168) target = $region20
        $region19: #{tpu_custom_call.1} parent=11 // pred_region
          _
        $region20: #{tpu_custom_call.1} parent=11 // pred_fallthru
          _
        // Predicated region
        $region21: #{tpu_custom_call.1} parent=11 // pred_check
          %p171 = pneg %p103
        $region22: #{tpu_custom_call.1} parent=11 // pred_check_branch
          %173 = sbr.rel (%p171) target = $region24
        $region23: #{tpu_custom_call.1} parent=11 // pred_region
          _
        $region24: #{tpu_custom_call.1} parent=11 // pred_fallthru
          _
        // Predicated region
        $region25: #{tpu_custom_call.1} parent=11 // pred_check
          %p174 = pneg %p124
        $region26: #{tpu_custom_call.1} parent=11 // pred_check_branch
          %176 = sbr.rel (%p174) target = $region28
        $region27: #{tpu_custom_call.1} parent=11 // pred_region
          _
        $region28: #{tpu_custom_call.1} parent=11 // pred_fallthru
          _
      $region12: #{tpu_custom_call.1} parent=5 // pred_fallthru
        _
      %p177 = scmp.lt.s32.totalorder %s14, 2
      // Predicated region
      $region29: #{tpu_custom_call.1} parent=5 // pred_check
        %p178 = pneg %p177
      $region30: #{tpu_custom_call.1} parent=5 // pred_check_branch
        %180 = sbr.rel (%p178) target = $region32
      $region31: #{tpu_custom_call.1} parent=5 // pred_region
        // Predicated region
        $region33: #{tpu_custom_call.1} parent=31 // pred_check
          %p181 = pneg %p34
        $region34: #{tpu_custom_call.1} parent=31 // pred_check_branch
          %183 = sbr.rel (%p181) target = $region36
        $region35: #{tpu_custom_call.1} parent=31 // pred_region
          %p184 = scmp.lt.s32.totalorder %s14, 1
          %s185 = scalar_select %p184, %s14, 1
          %s186 = smul.addr %s185, 32
          %s187 = smul.addr %s186, 4
          %s188 = scalar_lea.vmem %s0, %s187
        $region36: #{tpu_custom_call.1} parent=31 // pred_fallthru
          _
      $region32: #{tpu_custom_call.1} parent=5 // pred_fallthru
        _
      %p189 = scmp.le.s32.totalorder 1, %s14
      %p190 = scmp.lt.s32.totalorder %s14, 3
      %p191 = pnand %p189, %p190
      %p192 = pneg %p191
      // Predicated region
      $region37: #{tpu_custom_call.1} parent=5 // pred_check
        _
      $region38: #{tpu_custom_call.1} parent=5 // pred_check_branch
        %194 = sbr.rel (%p191) target = $region40
      $region39: #{tpu_custom_call.1} parent=5 // pred_region
        %s195 = ssub.s32 %s14, 1
        %p196 = scmp.lt.s32.totalorder %s19, 1
        %s197 = scalar_select %p196, %s19, 1
        %s198 = smul.addr %s197, 32
        %s199 = smul.addr %s198, 4
        %s200 = scalar_lea.vmem %s0, %s199
        %p201 = pneg %p40
        %p202 = pneg %p37
        %p203 = pneg %p61
        %p204 = pneg %p58
        %p205 = pneg %p82
        %p206 = pneg %p79
        %p207 = pneg %p103
        %p208 = pneg %p100
        %p209 = pneg %p124
        %p210 = pneg %p121
        %p211 = pneg %p150
        %p212 = pneg %p147
        %s213 = sand.u32 %s137, 1
        %s214 = scalar_lea.sflag [#allocation3], %s213
        %s215 = sand.u32 %s137, 1
        %s216 = smul.addr %s215, 16
        %s217 = scalar_lea.vmem [#allocation2], %s216
        %p218 = scmp.lt.s32.totalorder %s19, 1
        %s219 = scalar_select %p218, %s19, 1
        %s220 = smul.addr %s219, 32
        %s221 = smul.addr %s220, 4
        %s222 = scalar_lea.vmem %s0, %s221
        %v224 = vld [vmem:[%s222] sm:$0xf]
        %v225 = vld [vmem:[%s222 + $0x4] sm:$0xf]
        %v226 = vld [vmem:[%s222 + $0x8] sm:$0xf]
        %v227 = vld [vmem:[%s222 + $0xc] sm:$0xf]
        %v228 = vld [vmem:[%s222 + $0x10] sm:$0xf]
        %v229 = vld [vmem:[%s222 + $0x14] sm:$0xf]
        %v230 = vld [vmem:[%s222 + $0x18] sm:$0xf]
        %v231 = vld [vmem:[%s222 + $0x1c] sm:$0xf]
        %v232 = vld [vmem:[%s222 + $0x20] sm:$0xf]
        %v233 = vld [vmem:[%s222 + $0x24] sm:$0xf]
        %v234 = vld [vmem:[%s222 + $0x28] sm:$0xf]
        %v235 = vld [vmem:[%s222 + $0x2c] sm:$0xf]
        %v236 = vld [vmem:[%s222 + $0x30] sm:$0xf]
        %v237 = vld [vmem:[%s222 + $0x34] sm:$0xf]
        %v238 = vld [vmem:[%s222 + $0x38] sm:$0xf]
        %v239 = vld [vmem:[%s222 + $0x3c] sm:$0xf]
        %v240 = vld [vmem:[%s222 + $0x40] sm:$0xf]
        %v241 = vld [vmem:[%s222 + $0x44] sm:$0xf]
        %v242 = vld [vmem:[%s222 + $0x48] sm:$0xf]
        %v243 = vld [vmem:[%s222 + $0x4c] sm:$0xf]
        %v244 = vld [vmem:[%s222 + $0x50] sm:$0xf]
        %v245 = vld [vmem:[%s222 + $0x54] sm:$0xf]
        %v246 = vld [vmem:[%s222 + $0x58] sm:$0xf]
        %v247 = vld [vmem:[%s222 + $0x5c] sm:$0xf]
        %v248 = vld [vmem:[%s222 + $0x60] sm:$0xf]
        %v249 = vld [vmem:[%s222 + $0x64] sm:$0xf]
        %v250 = vld [vmem:[%s222 + $0x68] sm:$0xf]
        %v251 = vld [vmem:[%s222 + $0x6c] sm:$0xf]
        %v252 = vld [vmem:[%s222 + $0x70] sm:$0xf]
        %v253 = vld [vmem:[%s222 + $0x74] sm:$0xf]
        %v254 = vld [vmem:[%s222 + $0x78] sm:$0xf]
        %v255 = vld [vmem:[%s222 + $0x7c] sm:$0xf]
        %v288 = vunpack.c.l.b16 %v224
        %v289 = vunpack.c.l.b16 %v225
        %v290 = vunpack.c.l.b16 %v226
        %v291 = vunpack.c.l.b16 %v227
        %v292 = vunpack.c.l.b16 %v228
        %v293 = vunpack.c.l.b16 %v229
        %v294 = vunpack.c.l.b16 %v230
        %v295 = vunpack.c.l.b16 %v231
        %v296 = vunpack.c.l.b16 %v232
        %v297 = vunpack.c.l.b16 %v233
        %v298 = vunpack.c.l.b16 %v234
        %v299 = vunpack.c.l.b16 %v235
        %v300 = vunpack.c.l.b16 %v236
        %v301 = vunpack.c.l.b16 %v237
        %v302 = vunpack.c.l.b16 %v238
        %v303 = vunpack.c.l.b16 %v239
        %v304 = vunpack.c.l.b16 %v240
        %v305 = vunpack.c.l.b16 %v241
        %v306 = vunpack.c.l.b16 %v242
        %v307 = vunpack.c.l.b16 %v243
        %v308 = vunpack.c.l.b16 %v244
        %v309 = vunpack.c.l.b16 %v245
        %v310 = vunpack.c.l.b16 %v246
        %v311 = vunpack.c.l.b16 %v247
        %v312 = vunpack.c.l.b16 %v248
        %v313 = vunpack.c.l.b16 %v249
        %v314 = vunpack.c.l.b16 %v250
        %v315 = vunpack.c.l.b16 %v251
        %v316 = vunpack.c.l.b16 %v252
        %v317 = vunpack.c.l.b16 %v253
        %v318 = vunpack.c.l.b16 %v254
        %v319 = vunpack.c.l.b16 %v255
        %v320 = vpack.c.b16 %v289, %v288
        %v321 = vpack.c.b16 %v291, %v290
        %v322 = vpack.c.b16 %v293, %v292
        %v323 = vpack.c.b16 %v295, %v294
        %v324 = vpack.c.b16 %v297, %v296
        %v325 = vpack.c.b16 %v299, %v298
        %v326 = vpack.c.b16 %v301, %v300
        %v327 = vpack.c.b16 %v303, %v302
        %v328 = vpack.c.b16 %v305, %v304
        %v329 = vpack.c.b16 %v307, %v306
        %v330 = vpack.c.b16 %v309, %v308
        %v331 = vpack.c.b16 %v311, %v310
        %v332 = vpack.c.b16 %v313, %v312
        %v333 = vpack.c.b16 %v315, %v314
        %v334 = vpack.c.b16 %v317, %v316
        %v335 = vpack.c.b16 %v319, %v318
        %v337 = vshrl.u32 0, 16
        %v339 = vrot.slane %v337, 7
        %v340 = vshll.u32 0, 16
        %v342 = vor.u32 %v339, %v340
        %v344 = vshrl.u32 %v320, 16
        %v346 = vrot.slane %v344, 7
        %v347 = vshll.u32 %v320, 16
        %v349 = vor.u32 %v346, %v347
        %v351 = vshrl.u32 %v321, 16
        %v353 = vrot.slane %v351, 7
        %v354 = vshll.u32 %v321, 16
        %v356 = vor.u32 %v353, %v354
        %v358 = vshrl.u32 %v322, 16
        %v360 = vrot.slane %v358, 7
        %v361 = vshll.u32 %v322, 16
        %v363 = vor.u32 %v360, %v361
        %v365 = vshrl.u32 %v323, 16
        %v367 = vrot.slane %v365, 7
        %v368 = vshll.u32 %v323, 16
        %v370 = vor.u32 %v367, %v368
        %v372 = vshrl.u32 %v324, 16
        %v374 = vrot.slane %v372, 7
        %v375 = vshll.u32 %v324, 16
        %v377 = vor.u32 %v374, %v375
        %v379 = vshrl.u32 %v325, 16
        %v381 = vrot.slane %v379, 7
        %v382 = vshll.u32 %v325, 16
        %v384 = vor.u32 %v381, %v382
        %v386 = vshrl.u32 %v326, 16
        %v388 = vrot.slane %v386, 7
        %v389 = vshll.u32 %v326, 16
        %v391 = vor.u32 %v388, %v389
        %v393 = vshrl.u32 %v327, 16
        %v395 = vrot.slane %v393, 7
        %v396 = vshll.u32 %v327, 16
        %v398 = vor.u32 %v395, %v396
        %v400 = vshrl.u32 %v328, 16
        %v402 = vrot.slane %v400, 7
        %v403 = vshll.u32 %v328, 16
        %v405 = vor.u32 %v402, %v403
        %v407 = vshrl.u32 %v329, 16
        %v409 = vrot.slane %v407, 7
        %v410 = vshll.u32 %v329, 16
        %v412 = vor.u32 %v409, %v410
        %v414 = vshrl.u32 %v330, 16
        %v416 = vrot.slane %v414, 7
        %v417 = vshll.u32 %v330, 16
        %v419 = vor.u32 %v416, %v417
        %v421 = vshrl.u32 %v331, 16
        %v423 = vrot.slane %v421, 7
        %v424 = vshll.u32 %v331, 16
        %v426 = vor.u32 %v423, %v424
        %v428 = vshrl.u32 %v332, 16
        %v430 = vrot.slane %v428, 7
        %v431 = vshll.u32 %v332, 16
        %v433 = vor.u32 %v430, %v431
        %v435 = vshrl.u32 %v333, 16
        %v437 = vrot.slane %v435, 7
        %v438 = vshll.u32 %v333, 16
        %v440 = vor.u32 %v437, %v438
        %v442 = vshrl.u32 %v334, 16
        %v444 = vrot.slane %v442, 7
        %v445 = vshll.u32 %v334, 16
        %v447 = vor.u32 %v444, %v445
        %v449 = vshrl.u32 %v335, 16
        %v451 = vrot.slane %v449, 7
        %v452 = vshll.u32 %v335, 16
        %v454 = vor.u32 %v451, %v452
        %vm489 = vcmask 1040384
        %vm490 = vsmask.f32 256
        %vm491 = vmand %vm489, %vm490
        %v492 = vsel %vm491, 0, %v342
        %v493 = vsel %vm491, 0, %v349
        %v494 = vsel %vm491, 0, %v356
        %v495 = vsel %vm491, 0, %v363
        %v496 = vsel %vm491, 0, %v370
        %v497 = vsel %vm491, 0, %v377
        %v498 = vsel %vm491, 0, %v384
        %v499 = vsel %vm491, 0, %v391
        %v500 = vsel %vm491, 0, %v398
        %v501 = vsel %vm491, 0, %v405
        %v502 = vsel %vm491, 0, %v412
        %v503 = vsel %vm491, 0, %v419
        %v504 = vsel %vm491, 0, %v426
        %v505 = vsel %vm491, 0, %v433
        %v506 = vsel %vm491, 0, %v440
        %v507 = vsel %vm491, 0, %v447
        %v508 = vsel %vm491, 0, %v454
        %v509 = vsel %vm491, %v339, 0
        %v510 = vsel %vm491, %v346, 0
        %v511 = vsel %vm491, %v353, 0
        %v512 = vsel %vm491, %v360, 0
        %v513 = vsel %vm491, %v367, 0
        %v514 = vsel %vm491, %v374, 0
        %v515 = vsel %vm491, %v381, 0
        %v516 = vsel %vm491, %v388, 0
        %v517 = vsel %vm491, %v395, 0
        %v518 = vsel %vm491, %v402, 0
        %v519 = vsel %vm491, %v409, 0
        %v520 = vsel %vm491, %v416, 0
        %v521 = vsel %vm491, %v423, 0
        %v522 = vsel %vm491, %v430, 0
        %v523 = vsel %vm491, %v437, 0
        %v524 = vsel %vm491, %v444, 0
        %v525 = vsel %vm491, %v451, 0
        %vm526 = vsmask.f32 7424
        %v528 = vshrl.u32 %v492, 16
        %v530 = vshll.u32 %v492, 16
        %v532 = vrot.slane %v530, 1
        %v533 = vor.u32 %v528, %v532
        %v535 = vshll.u32 %v509, 16
        %v537 = vrot.slane %v535, 1
        %v538 = vsel %vm526, %v533, %v537
        %v540 = vshrl.u32 %v493, 16
        %v542 = vshll.u32 %v493, 16
        %v544 = vrot.slane %v542, 1
        %v545 = vor.u32 %v540, %v544
        %v547 = vshll.u32 %v510, 16
        %v549 = vrot.slane %v547, 1
        %v550 = vsel %vm526, %v545, %v549
        %v552 = vshrl.u32 %v494, 16
        %v554 = vshll.u32 %v494, 16
        %v556 = vrot.slane %v554, 1
        %v557 = vor.u32 %v552, %v556
        %v559 = vshll.u32 %v511, 16
        %v561 = vrot.slane %v559, 1
        %v562 = vsel %vm526, %v557, %v561
        %v564 = vshrl.u32 %v495, 16
        %v566 = vshll.u32 %v495, 16
        %v568 = vrot.slane %v566, 1
        %v569 = vor.u32 %v564, %v568
        %v571 = vshll.u32 %v512, 16
        %v573 = vrot.slane %v571, 1
        %v574 = vsel %vm526, %v569, %v573
        %v576 = vshrl.u32 %v496, 16
        %v578 = vshll.u32 %v496, 16
        %v580 = vrot.slane %v578, 1
        %v581 = vor.u32 %v576, %v580
        %v583 = vshll.u32 %v513, 16
        %v585 = vrot.slane %v583, 1
        %v586 = vsel %vm526, %v581, %v585
        %v588 = vshrl.u32 %v497, 16
        %v590 = vshll.u32 %v497, 16
        %v592 = vrot.slane %v590, 1
        %v593 = vor.u32 %v588, %v592
        %v595 = vshll.u32 %v514, 16
        %v597 = vrot.slane %v595, 1
        %v598 = vsel %vm526, %v593, %v597
        %v600 = vshrl.u32 %v498, 16
        %v602 = vshll.u32 %v498, 16
        %v604 = vrot.slane %v602, 1
        %v605 = vor.u32 %v600, %v604
        %v607 = vshll.u32 %v515, 16
        %v609 = vrot.slane %v607, 1
        %v610 = vsel %vm526, %v605, %v609
        %v612 = vshrl.u32 %v499, 16
        %v614 = vshll.u32 %v499, 16
        %v616 = vrot.slane %v614, 1
        %v617 = vor.u32 %v612, %v616
        %v619 = vshll.u32 %v516, 16
        %v621 = vrot.slane %v619, 1
        %v622 = vsel %vm526, %v617, %v621
        %v624 = vshrl.u32 %v500, 16
        %v626 = vshll.u32 %v500, 16
        %v628 = vrot.slane %v626, 1
        %v629 = vor.u32 %v624, %v628
        %v631 = vshll.u32 %v517, 16
        %v633 = vrot.slane %v631, 1
        %v634 = vsel %vm526, %v629, %v633
        %v636 = vshrl.u32 %v501, 16
        %v638 = vshll.u32 %v501, 16
        %v640 = vrot.slane %v638, 1
        %v641 = vor.u32 %v636, %v640
        %v643 = vshll.u32 %v518, 16
        %v645 = vrot.slane %v643, 1
        %v646 = vsel %vm526, %v641, %v645
        %v648 = vshrl.u32 %v502, 16
        %v650 = vshll.u32 %v502, 16
        %v652 = vrot.slane %v650, 1
        %v653 = vor.u32 %v648, %v652
        %v655 = vshll.u32 %v519, 16
        %v657 = vrot.slane %v655, 1
        %v658 = vsel %vm526, %v653, %v657
        %v660 = vshrl.u32 %v503, 16
        %v662 = vshll.u32 %v503, 16
        %v664 = vrot.slane %v662, 1
        %v665 = vor.u32 %v660, %v664
        %v667 = vshll.u32 %v520, 16
        %v669 = vrot.slane %v667, 1
        %v670 = vsel %vm526, %v665, %v669
        %v672 = vshrl.u32 %v504, 16
        %v674 = vshll.u32 %v504, 16
        %v676 = vrot.slane %v674, 1
        %v677 = vor.u32 %v672, %v676
        %v679 = vshll.u32 %v521, 16
        %v681 = vrot.slane %v679, 1
        %v682 = vsel %vm526, %v677, %v681
        %v684 = vshrl.u32 %v505, 16
        %v686 = vshll.u32 %v505, 16
        %v688 = vrot.slane %v686, 1
        %v689 = vor.u32 %v684, %v688
        %v691 = vshll.u32 %v522, 16
        %v693 = vrot.slane %v691, 1
        %v694 = vsel %vm526, %v689, %v693
        %v696 = vshrl.u32 %v506, 16
        %v698 = vshll.u32 %v506, 16
        %v700 = vrot.slane %v698, 1
        %v701 = vor.u32 %v696, %v700
        %v703 = vshll.u32 %v523, 16
        %v705 = vrot.slane %v703, 1
        %v706 = vsel %vm526, %v701, %v705
        %v708 = vshrl.u32 %v507, 16
        %v710 = vshll.u32 %v507, 16
        %v712 = vrot.slane %v710, 1
        %v713 = vor.u32 %v708, %v712
        %v715 = vshll.u32 %v524, 16
        %v717 = vrot.slane %v715, 1
        %v718 = vsel %vm526, %v713, %v717
        %v720 = vshrl.u32 %v508, 16
        %v722 = vshll.u32 %v508, 16
        %v724 = vrot.slane %v722, 1
        %v725 = vor.u32 %v720, %v724
        %v727 = vshll.u32 %v525, 16
        %v729 = vrot.slane %v727, 1
        %v730 = vsel %vm526, %v725, %v729
        %731 = vrot.lane.b32.xlu0 %v538, 4
        %v732 = vpop.permute.xlu0 %731
        %733 = vrot.lane.b32.xlu0 %v550, 4
        %v734 = vpop.permute.xlu0 %733
        %735 = vrot.lane.b32.xlu0 %v562, 4
        %v736 = vpop.permute.xlu0 %735
        %737 = vrot.lane.b32.xlu0 %v574, 4
        %v738 = vpop.permute.xlu0 %737
        %739 = vrot.lane.b32.xlu0 %v586, 4
        %v740 = vpop.permute.xlu0 %739
        %741 = vrot.lane.b32.xlu0 %v598, 4
        %v742 = vpop.permute.xlu0 %741
        %743 = vrot.lane.b32.xlu0 %v610, 4
        %v744 = vpop.permute.xlu0 %743
        %745 = vrot.lane.b32.xlu0 %v622, 4
        %v746 = vpop.permute.xlu0 %745
        %747 = vrot.lane.b32.xlu0 %v634, 4
        %v748 = vpop.permute.xlu0 %747
        %749 = vrot.lane.b32.xlu0 %v646, 4
        %v750 = vpop.permute.xlu0 %749
        %751 = vrot.lane.b32.xlu0 %v658, 4
        %v752 = vpop.permute.xlu0 %751
        %753 = vrot.lane.b32.xlu0 %v670, 4
        %v754 = vpop.permute.xlu0 %753
        %755 = vrot.lane.b32.xlu0 %v682, 4
        %v756 = vpop.permute.xlu0 %755
        %757 = vrot.lane.b32.xlu0 %v694, 4
        %v758 = vpop.permute.xlu0 %757
        %759 = vrot.lane.b32.xlu0 %v706, 4
        %v760 = vpop.permute.xlu0 %759
        %761 = vrot.lane.b32.xlu0 %v718, 4
        %v762 = vpop.permute.xlu0 %761
        %763 = vrot.lane.b32.xlu0 %v730, 4
        %v764 = vpop.permute.xlu0 %763
        %vm799 = vcmask 1046528
        %v800 = vrot.slane %v492, 1
        %v801 = vrot.slane %v509, 1
        %v802 = vsel %vm799, %v800, %v801
        %v803 = vrot.slane %v493, 1
        %v804 = vrot.slane %v510, 1
        %v805 = vsel %vm799, %v803, %v804
        %v806 = vrot.slane %v494, 1
        %v807 = vrot.slane %v511, 1
        %v808 = vsel %vm799, %v806, %v807
        %v809 = vrot.slane %v495, 1
        %v810 = vrot.slane %v512, 1
        %v811 = vsel %vm799, %v809, %v810
        %v812 = vrot.slane %v496, 1
        %v813 = vrot.slane %v513, 1
        %v814 = vsel %vm799, %v812, %v813
        %v815 = vrot.slane %v497, 1
        %v816 = vrot.slane %v514, 1
        %v817 = vsel %vm799, %v815, %v816
        %v818 = vrot.slane %v498, 1
        %v819 = vrot.slane %v515, 1
        %v820 = vsel %vm799, %v818, %v819
        %v821 = vrot.slane %v499, 1
        %v822 = vrot.slane %v516, 1
        %v823 = vsel %vm799, %v821, %v822
        %v824 = vrot.slane %v500, 1
        %v825 = vrot.slane %v517, 1
        %v826 = vsel %vm799, %v824, %v825
        %v827 = vrot.slane %v501, 1
        %v828 = vrot.slane %v518, 1
        %v829 = vsel %vm799, %v827, %v828
        %v830 = vrot.slane %v502, 1
        %v831 = vrot.slane %v519, 1
        %v832 = vsel %vm799, %v830, %v831
        %v833 = vrot.slane %v503, 1
        %v834 = vrot.slane %v520, 1
        %v835 = vsel %vm799, %v833, %v834
        %v836 = vrot.slane %v504, 1
        %v837 = vrot.slane %v521, 1
        %v838 = vsel %vm799, %v836, %v837
        %v839 = vrot.slane %v505, 1
        %v840 = vrot.slane %v522, 1
        %v841 = vsel %vm799, %v839, %v840
        %v842 = vrot.slane %v506, 1
        %v843 = vrot.slane %v523, 1
        %v844 = vsel %vm799, %v842, %v843
        %v845 = vrot.slane %v507, 1
        %v846 = vrot.slane %v524, 1
        %v847 = vsel %vm799, %v845, %v846
        %v848 = vrot.slane %v508, 1
        %v849 = vrot.slane %v525, 1
        %v850 = vsel %vm799, %v848, %v849
        %851 = vrot.lane.b32.xlu0 %v802, 8
        %v852 = vpop.permute.xlu0 %851
        %853 = vrot.lane.b32.xlu0 %v805, 8
        %v854 = vpop.permute.xlu0 %853
        %855 = vrot.lane.b32.xlu0 %v808, 8
        %v856 = vpop.permute.xlu0 %855
        %857 = vrot.lane.b32.xlu0 %v811, 8
        %v858 = vpop.permute.xlu0 %857
        %859 = vrot.lane.b32.xlu0 %v814, 8
        %v860 = vpop.permute.xlu0 %859
        %861 = vrot.lane.b32.xlu0 %v817, 8
        %v862 = vpop.permute.xlu0 %861
        %863 = vrot.lane.b32.xlu0 %v820, 8
        %v864 = vpop.permute.xlu0 %863
        %865 = vrot.lane.b32.xlu0 %v823, 8
        %v866 = vpop.permute.xlu0 %865
        %867 = vrot.lane.b32.xlu0 %v826, 8
        %v868 = vpop.permute.xlu0 %867
        %869 = vrot.lane.b32.xlu0 %v829, 8
        %v870 = vpop.permute.xlu0 %869
        %871 = vrot.lane.b32.xlu0 %v832, 8
        %v872 = vpop.permute.xlu0 %871
        %873 = vrot.lane.b32.xlu0 %v835, 8
        %v874 = vpop.permute.xlu0 %873
        %875 = vrot.lane.b32.xlu0 %v838, 8
        %v876 = vpop.permute.xlu0 %875
        %877 = vrot.lane.b32.xlu0 %v841, 8
        %v878 = vpop.permute.xlu0 %877
        %879 = vrot.lane.b32.xlu0 %v844, 8
        %v880 = vpop.permute.xlu0 %879
        %881 = vrot.lane.b32.xlu0 %v847, 8
        %v882 = vpop.permute.xlu0 %881
        %883 = vrot.lane.b32.xlu0 %v850, 8
        %v884 = vpop.permute.xlu0 %883
        %vm885 = vcmask 31744
        %v887 = vsel %vm885, %v492, %v732
        %v889 = vsel %vm885, %v493, %v734
        %v891 = vsel %vm885, %v494, %v736
        %v893 = vsel %vm885, %v495, %v738
        %v895 = vsel %vm885, %v496, %v740
        %v897 = vsel %vm885, %v497, %v742
        %v899 = vsel %vm885, %v498, %v744
        %v901 = vsel %vm885, %v499, %v746
        %v903 = vsel %vm885, %v500, %v748
        %v905 = vsel %vm885, %v501, %v750
        %v907 = vsel %vm885, %v502, %v752
        %v909 = vsel %vm885, %v503, %v754
        %v911 = vsel %vm885, %v504, %v756
        %v913 = vsel %vm885, %v505, %v758
        %v915 = vsel %vm885, %v506, %v760
        %v917 = vsel %vm885, %v507, %v762
        %v919 = vsel %vm885, %v508, %v764
        %vm920 = vcmask 64512
        %v922 = vsel %vm920, %v887, %v852
        %v924 = vsel %vm920, %v889, %v854
        %v926 = vsel %vm920, %v891, %v856
        %v928 = vsel %vm920, %v893, %v858
        %v930 = vsel %vm920, %v895, %v860
        %v932 = vsel %vm920, %v897, %v862
        %v934 = vsel %vm920, %v899, %v864
        %v936 = vsel %vm920, %v901, %v866
        %v938 = vsel %vm920, %v903, %v868
        %v940 = vsel %vm920, %v905, %v870
        %v942 = vsel %vm920, %v907, %v872
        %v944 = vsel %vm920, %v909, %v874
        %v946 = vsel %vm920, %v911, %v876
        %v948 = vsel %vm920, %v913, %v878
        %v950 = vsel %vm920, %v915, %v880
        %v952 = vsel %vm920, %v917, %v882
        %v954 = vsel %vm920, %v919, %v884
        %971 = vrot.lane.b32.xlu0 %v924, 12
        %v972 = vpop.permute.xlu0 %971
        %973 = vrot.lane.b32.xlu0 %v926, 12
        %v974 = vpop.permute.xlu0 %973
        %975 = vrot.lane.b32.xlu0 %v928, 12
        %v976 = vpop.permute.xlu0 %975
        %977 = vrot.lane.b32.xlu0 %v930, 12
        %v978 = vpop.permute.xlu0 %977
        %979 = vrot.lane.b32.xlu0 %v932, 12
        %v980 = vpop.permute.xlu0 %979
        %981 = vrot.lane.b32.xlu0 %v934, 12
        %v982 = vpop.permute.xlu0 %981
        %983 = vrot.lane.b32.xlu0 %v936, 12
        %v984 = vpop.permute.xlu0 %983
        %985 = vrot.lane.b32.xlu0 %v938, 12
        %v986 = vpop.permute.xlu0 %985
        %987 = vrot.lane.b32.xlu0 %v940, 12
        %v988 = vpop.permute.xlu0 %987
        %989 = vrot.lane.b32.xlu0 %v942, 12
        %v990 = vpop.permute.xlu0 %989
        %991 = vrot.lane.b32.xlu0 %v944, 12
        %v992 = vpop.permute.xlu0 %991
        %993 = vrot.lane.b32.xlu0 %v946, 12
        %v994 = vpop.permute.xlu0 %993
        %995 = vrot.lane.b32.xlu0 %v948, 12
        %v996 = vpop.permute.xlu0 %995
        %997 = vrot.lane.b32.xlu0 %v950, 12
        %v998 = vpop.permute.xlu0 %997
        %999 = vrot.lane.b32.xlu0 %v952, 12
        %v1000 = vpop.permute.xlu0 %999
        %1001 = vrot.lane.b32.xlu0 %v954, 12
        %v1002 = vpop.permute.xlu0 %1001
        %1004 = vrot.lane.b32.xlu0 %v926, 24
        %v1005 = vpop.permute.xlu0 %1004
        %1006 = vrot.lane.b32.xlu0 %v928, 24
        %v1007 = vpop.permute.xlu0 %1006
        %1008 = vrot.lane.b32.xlu0 %v930, 24
        %v1009 = vpop.permute.xlu0 %1008
        %1010 = vrot.lane.b32.xlu0 %v932, 24
        %v1011 = vpop.permute.xlu0 %1010
        %1012 = vrot.lane.b32.xlu0 %v934, 24
        %v1013 = vpop.permute.xlu0 %1012
        %1014 = vrot.lane.b32.xlu0 %v936, 24
        %v1015 = vpop.permute.xlu0 %1014
        %1016 = vrot.lane.b32.xlu0 %v938, 24
        %v1017 = vpop.permute.xlu0 %1016
        %1018 = vrot.lane.b32.xlu0 %v940, 24
        %v1019 = vpop.permute.xlu0 %1018
        %1020 = vrot.lane.b32.xlu0 %v942, 24
        %v1021 = vpop.permute.xlu0 %1020
        %1022 = vrot.lane.b32.xlu0 %v944, 24
        %v1023 = vpop.permute.xlu0 %1022
        %1024 = vrot.lane.b32.xlu0 %v946, 24
        %v1025 = vpop.permute.xlu0 %1024
        %1026 = vrot.lane.b32.xlu0 %v948, 24
        %v1027 = vpop.permute.xlu0 %1026
        %1028 = vrot.lane.b32.xlu0 %v950, 24
        %v1029 = vpop.permute.xlu0 %1028
        %1030 = vrot.lane.b32.xlu0 %v952, 24
        %v1031 = vpop.permute.xlu0 %1030
        %1032 = vrot.lane.b32.xlu0 %v954, 24
        %v1033 = vpop.permute.xlu0 %1032
        %1034 = vrot.lane.b32.xlu0 %v922, 24
        %v1035 = vpop.permute.xlu0 %1034
        %vm1036 = vcmask 97280
        %v1038 = vsel %vm1036, %v922, %v972
        %v1040 = vsel %vm1036, %v924, %v974
        %v1042 = vsel %vm1036, %v926, %v976
        %v1044 = vsel %vm1036, %v928, %v978
        %v1046 = vsel %vm1036, %v930, %v980
        %v1048 = vsel %vm1036, %v932, %v982
        %v1050 = vsel %vm1036, %v934, %v984
        %v1052 = vsel %vm1036, %v936, %v986
        %v1054 = vsel %vm1036, %v938, %v988
        %v1056 = vsel %vm1036, %v940, %v990
        %v1058 = vsel %vm1036, %v942, %v992
        %v1060 = vsel %vm1036, %v944, %v994
        %v1062 = vsel %vm1036, %v946, %v996
        %v1064 = vsel %vm1036, %v948, %v998
        %v1066 = vsel %vm1036, %v950, %v1000
        %v1068 = vsel %vm1036, %v952, %v1002
        %vm1069 = vcmask 195584
        %v1071 = vsel %vm1069, %v1038, %v1005
        %v1073 = vsel %vm1069, %v1040, %v1007
        %v1075 = vsel %vm1069, %v1042, %v1009
        %v1077 = vsel %vm1069, %v1044, %v1011
        %v1079 = vsel %vm1069, %v1046, %v1013
        %v1081 = vsel %vm1069, %v1048, %v1015
        %v1083 = vsel %vm1069, %v1050, %v1017
        %v1085 = vsel %vm1069, %v1052, %v1019
        %v1087 = vsel %vm1069, %v1054, %v1021
        %v1089 = vsel %vm1069, %v1056, %v1023
        %v1091 = vsel %vm1069, %v1058, %v1025
        %v1093 = vsel %vm1069, %v1060, %v1027
        %v1095 = vsel %vm1069, %v1062, %v1029
        %v1097 = vsel %vm1069, %v1064, %v1031
        %v1099 = vsel %vm1069, %v1066, %v1033
        %v1101 = vsel %vm1069, %v1068, %v1035
        %v1102 = vld [vmem:[%s1] sm:$0xf]
        %v1103 = vld [vmem:[%s1 + $0x4] sm:$0xf]
        %v1104 = vld [vmem:[%s1 + $0x8] sm:$0xf]
        %v1105 = vld [vmem:[%s1 + $0xc] sm:$0xf]
        %v1106 = vld [vmem:[%s1 + $0x10] sm:$0x3]
        %v1107 = vld [vmem:[%s2] sm:$0x1]
        %v1109 = vperm.slane %v1107, 0
        %v1116 = vunpack.c.l.b16 %v1102
        %v1117 = vunpack.c.l.b16 %v1103
        %v1118 = vunpack.c.l.b16 %v1104
        %v1119 = vunpack.c.l.b16 %v1105
        %v1120 = vunpack.c.l.b16 %v1106
        %v1121 = vpack.c.b16 %v1117, %v1116
        %v1122 = vpack.c.b16 %v1119, %v1118
        %v1123 = vpack.c.b16 %v1120, %v1120
        %vm1126 = vcmask 293888
        %v1127 = vsel %vm1126, %v1071, 0
        %v1129 = vsel %vm1126, %v1073, 0
        %v1131 = vsel %vm1126, %v1075, 0
        %v1133 = vsel %vm1126, %v1077, 0
        %v1135 = vsel %vm1126, %v1079, 0
        %v1137 = vsel %vm1126, %v1081, 0
        %v1139 = vsel %vm1126, %v1083, 0
        %v1141 = vsel %vm1126, %v1085, 0
        %v1143 = vsel %vm1126, %v1087, 0
        %v1145 = vsel %vm1126, %v1089, 0
        %v1147 = vsel %vm1126, %v1091, 0
        %v1149 = vsel %vm1126, %v1093, 0
        %v1151 = vsel %vm1126, %v1095, 0
        %v1153 = vsel %vm1126, %v1097, 0
        %v1155 = vsel %vm1126, %v1099, 0
        %v1157 = vsel %vm1126, %v1101, 0
        %vm1159 = vcmask 1041408
        %v1161 = vsel %vm1159, %v1123, 0
        %1163 = vmatpush.bf16.msra.mxu0 0
        %1164 = vmatpush.bf16.msra.mxu0 0
        %1165 = vmatpush.bf16.msra.mxu0 0
        %1166 = vmatpush.bf16.msra.mxu0 0
        %1167 = vmatpush.bf16.msra.mxu0 0
        %1168 = vmatpush.bf16.msra.mxu0 %v1161
        %1169 = vmatpush.bf16.msra.mxu0 %v1122
        %1170 = vmatpush.bf16.msra.mxu0 %v1121
        %1171 = vmatmul.bf16.gmra.mxu0 %v1127
        %v1172 = vpop.f32.mrf.mxu0
        %v1173 = vadd.f32 %v1109, %v1172
        %v1174 = vpop.f32.mrf.mxu0
        %v1175 = vadd.f32 %v1109, %v1174
        %1176 = vmatmul.bf16.gmra.mxu0 %v1129
        %v1177 = vpop.f32.mrf.mxu0
        %v1178 = vadd.f32 %v1109, %v1177
        %v1179 = vpop.f32.mrf.mxu0
        %v1180 = vadd.f32 %v1109, %v1179
        %1181 = vmatmul.bf16.gmra.mxu0 %v1131
        %v1182 = vpop.f32.mrf.mxu0
        %v1183 = vadd.f32 %v1109, %v1182
        %v1184 = vpop.f32.mrf.mxu0
        %v1185 = vadd.f32 %v1109, %v1184
        %1186 = vmatmul.bf16.gmra.mxu0 %v1133
        %v1187 = vpop.f32.mrf.mxu0
        %v1188 = vadd.f32 %v1109, %v1187
        %v1189 = vpop.f32.mrf.mxu0
        %v1190 = vadd.f32 %v1109, %v1189
        %1191 = vmatmul.bf16.gmra.mxu0 %v1135
        %v1192 = vpop.f32.mrf.mxu0
        %v1193 = vadd.f32 %v1109, %v1192
        %v1194 = vpop.f32.mrf.mxu0
        %v1195 = vadd.f32 %v1109, %v1194
        %1196 = vmatmul.bf16.gmra.mxu0 %v1137
        %v1197 = vpop.f32.mrf.mxu0
        %v1198 = vadd.f32 %v1109, %v1197
        %v1199 = vpop.f32.mrf.mxu0
        %v1200 = vadd.f32 %v1109, %v1199
        %1201 = vmatmul.bf16.gmra.mxu0 %v1139
        %v1202 = vpop.f32.mrf.mxu0
        %v1203 = vadd.f32 %v1109, %v1202
        %v1204 = vpop.f32.mrf.mxu0
        %v1205 = vadd.f32 %v1109, %v1204
        %1206 = vmatmul.bf16.gmra.mxu0 %v1141
        %v1207 = vpop.f32.mrf.mxu0
        %v1208 = vadd.f32 %v1109, %v1207
        %v1209 = vpop.f32.mrf.mxu0
        %v1210 = vadd.f32 %v1109, %v1209
        %1211 = vmatmul.bf16.gmra.mxu0 %v1143
        %v1212 = vpop.f32.mrf.mxu0
        %v1213 = vadd.f32 %v1109, %v1212
        %v1214 = vpop.f32.mrf.mxu0
        %v1215 = vadd.f32 %v1109, %v1214
        %1216 = vmatmul.bf16.gmra.mxu0 %v1145
        %v1217 = vpop.f32.mrf.mxu0
        %v1218 = vadd.f32 %v1109, %v1217
        %v1219 = vpop.f32.mrf.mxu0
        %v1220 = vadd.f32 %v1109, %v1219
        %1221 = vmatmul.bf16.gmra.mxu0 %v1147
        %v1222 = vpop.f32.mrf.mxu0
        %v1223 = vadd.f32 %v1109, %v1222
        %v1224 = vpop.f32.mrf.mxu0
        %v1225 = vadd.f32 %v1109, %v1224
        %1226 = vmatmul.bf16.gmra.mxu0 %v1149
        %v1227 = vpop.f32.mrf.mxu0
        %v1228 = vadd.f32 %v1109, %v1227
        %v1229 = vpop.f32.mrf.mxu0
        %v1230 = vadd.f32 %v1109, %v1229
        %1231 = vmatmul.bf16.gmra.mxu0 %v1151
        %v1232 = vpop.f32.mrf.mxu0
        %v1233 = vadd.f32 %v1109, %v1232
        %v1234 = vpop.f32.mrf.mxu0
        %v1235 = vadd.f32 %v1109, %v1234
        %1236 = vmatmul.bf16.gmra.mxu0 %v1153
        %v1237 = vpop.f32.mrf.mxu0
        %v1238 = vadd.f32 %v1109, %v1237
        %v1239 = vpop.f32.mrf.mxu0
        %v1240 = vadd.f32 %v1109, %v1239
        %1241 = vmatmul.bf16.gmra.mxu0 %v1155
        %v1242 = vpop.f32.mrf.mxu0
        %v1243 = vadd.f32 %v1109, %v1242
        %v1244 = vpop.f32.mrf.mxu0
        %v1245 = vadd.f32 %v1109, %v1244
        %1246 = vmatmul.bf16.gmra.mxu0 %v1157
        %v1247 = vpop.f32.mrf.mxu0
        %v1248 = vadd.f32 %v1109, %v1247
        %v1249 = vpop.f32.mrf.mxu0
        %v1250 = vadd.f32 %v1109, %v1249
        %1251 = vdwg.mxu0
        %v1252 = vmax.f32 %v1173, 0.0
        %v1253 = vmax.f32 %v1175, 0.0
        %v1254 = vmax.f32 %v1178, 0.0
        %v1255 = vmax.f32 %v1180, 0.0
        %v1256 = vmax.f32 %v1183, 0.0
        %v1257 = vmax.f32 %v1185, 0.0
        %v1258 = vmax.f32 %v1188, 0.0
        %v1259 = vmax.f32 %v1190, 0.0
        %v1260 = vmax.f32 %v1193, 0.0
        %v1261 = vmax.f32 %v1195, 0.0
        %v1262 = vmax.f32 %v1198, 0.0
        %v1263 = vmax.f32 %v1200, 0.0
        %v1264 = vmax.f32 %v1203, 0.0
        %v1265 = vmax.f32 %v1205, 0.0
        %v1266 = vmax.f32 %v1208, 0.0
        %v1267 = vmax.f32 %v1210, 0.0
        %v1268 = vmax.f32 %v1213, 0.0
        %v1269 = vmax.f32 %v1215, 0.0
        %v1270 = vmax.f32 %v1218, 0.0
        %v1271 = vmax.f32 %v1220, 0.0
        %v1272 = vmax.f32 %v1223, 0.0
        %v1273 = vmax.f32 %v1225, 0.0
        %v1274 = vmax.f32 %v1228, 0.0
        %v1275 = vmax.f32 %v1230, 0.0
        %v1276 = vmax.f32 %v1233, 0.0
        %v1277 = vmax.f32 %v1235, 0.0
        %v1278 = vmax.f32 %v1238, 0.0
        %v1279 = vmax.f32 %v1240, 0.0
        %v1280 = vmax.f32 %v1243, 0.0
        %v1281 = vmax.f32 %v1245, 0.0
        %v1282 = vmax.f32 %v1248, 0.0
        %v1283 = vmax.f32 %v1250, 0.0
        %v1284 = vpack.c.bf16 %v1252, %v1252
        %v1285 = vpack.c.bf16 %v1253, %v1253
        %v1286 = vpack.c.bf16 %v1254, %v1254
        %v1287 = vpack.c.bf16 %v1255, %v1255
        %v1288 = vpack.c.bf16 %v1256, %v1256
        %v1289 = vpack.c.bf16 %v1257, %v1257
        %v1290 = vpack.c.bf16 %v1258, %v1258
        %v1291 = vpack.c.bf16 %v1259, %v1259
        %v1292 = vpack.c.bf16 %v1260, %v1260
        %v1293 = vpack.c.bf16 %v1261, %v1261
        %v1294 = vpack.c.bf16 %v1262, %v1262
        %v1295 = vpack.c.bf16 %v1263, %v1263
        %v1296 = vpack.c.bf16 %v1264, %v1264
        %v1297 = vpack.c.bf16 %v1265, %v1265
        %v1298 = vpack.c.bf16 %v1266, %v1266
        %v1299 = vpack.c.bf16 %v1267, %v1267
        %v1300 = vpack.c.bf16 %v1268, %v1268
        %v1301 = vpack.c.bf16 %v1269, %v1269
        %v1302 = vpack.c.bf16 %v1270, %v1270
        %v1303 = vpack.c.bf16 %v1271, %v1271
        %v1304 = vpack.c.bf16 %v1272, %v1272
        %v1305 = vpack.c.bf16 %v1273, %v1273
        %v1306 = vpack.c.bf16 %v1274, %v1274
        %v1307 = vpack.c.bf16 %v1275, %v1275
        %v1308 = vpack.c.bf16 %v1276, %v1276
        %v1309 = vpack.c.bf16 %v1277, %v1277
        %v1310 = vpack.c.bf16 %v1278, %v1278
        %v1311 = vpack.c.bf16 %v1279, %v1279
        %v1312 = vpack.c.bf16 %v1280, %v1280
        %v1313 = vpack.c.bf16 %v1281, %v1281
        %v1314 = vpack.c.bf16 %v1282, %v1282
        %v1315 = vpack.c.bf16 %v1283, %v1283
        %v1348 = vunpack.c.l.b16 %v1284
        %v1349 = vunpack.c.l.b16 %v1285
        %v1350 = vunpack.c.l.b16 %v1286
        %v1351 = vunpack.c.l.b16 %v1287
        %v1352 = vunpack.c.l.b16 %v1288
        %v1353 = vunpack.c.l.b16 %v1289
        %v1354 = vunpack.c.l.b16 %v1290
        %v1355 = vunpack.c.l.b16 %v1291
        %v1356 = vunpack.c.l.b16 %v1292
        %v1357 = vunpack.c.l.b16 %v1293
        %v1358 = vunpack.c.l.b16 %v1294
        %v1359 = vunpack.c.l.b16 %v1295
        %v1360 = vunpack.c.l.b16 %v1296
        %v1361 = vunpack.c.l.b16 %v1297
        %v1362 = vunpack.c.l.b16 %v1298
        %v1363 = vunpack.c.l.b16 %v1299
        %v1364 = vunpack.c.l.b16 %v1300
        %v1365 = vunpack.c.l.b16 %v1301
        %v1366 = vunpack.c.l.b16 %v1302
        %v1367 = vunpack.c.l.b16 %v1303
        %v1368 = vunpack.c.l.b16 %v1304
        %v1369 = vunpack.c.l.b16 %v1305
        %v1370 = vunpack.c.l.b16 %v1306
        %v1371 = vunpack.c.l.b16 %v1307
        %v1372 = vunpack.c.l.b16 %v1308
        %v1373 = vunpack.c.l.b16 %v1309
        %v1374 = vunpack.c.l.b16 %v1310
        %v1375 = vunpack.c.l.b16 %v1311
        %v1376 = vunpack.c.l.b16 %v1312
        %v1377 = vunpack.c.l.b16 %v1313
        %v1378 = vunpack.c.l.b16 %v1314
        %v1379 = vunpack.c.l.b16 %v1315
        %v1380 = vpack.c.b16 %v1349, %v1348
        %v1381 = vpack.c.b16 %v1351, %v1350
        %v1382 = vpack.c.b16 %v1353, %v1352
        %v1383 = vpack.c.b16 %v1355, %v1354
        %v1384 = vpack.c.b16 %v1357, %v1356
        %v1385 = vpack.c.b16 %v1359, %v1358
        %v1386 = vpack.c.b16 %v1361, %v1360
        %v1387 = vpack.c.b16 %v1363, %v1362
        %v1388 = vpack.c.b16 %v1365, %v1364
        %v1389 = vpack.c.b16 %v1367, %v1366
        %v1390 = vpack.c.b16 %v1369, %v1368
        %v1391 = vpack.c.b16 %v1371, %v1370
        %v1392 = vpack.c.b16 %v1373, %v1372
        %v1393 = vpack.c.b16 %v1375, %v1374
        %v1394 = vpack.c.b16 %v1377, %v1376
        %v1395 = vpack.c.b16 %v1379, %v1378
        %v1397 = vshrl.u32 %v1380, 16
        %v1399 = vrot.slane %v1397, 7
        %v1400 = vshll.u32 %v1380, 16
        %v1402 = vor.u32 %v1399, %v1400
        %v1404 = vshrl.u32 %v1381, 16
        %v1406 = vrot.slane %v1404, 7
        %v1407 = vshll.u32 %v1381, 16
        %v1409 = vor.u32 %v1406, %v1407
        %v1411 = vshrl.u32 %v1382, 16
        %v1413 = vrot.slane %v1411, 7
        %v1414 = vshll.u32 %v1382, 16
        %v1416 = vor.u32 %v1413, %v1414
        %v1418 = vshrl.u32 %v1383, 16
        %v1420 = vrot.slane %v1418, 7
        %v1421 = vshll.u32 %v1383, 16
        %v1423 = vor.u32 %v1420, %v1421
        %v1425 = vshrl.u32 %v1384, 16
        %v1427 = vrot.slane %v1425, 7
        %v1428 = vshll.u32 %v1384, 16
        %v1430 = vor.u32 %v1427, %v1428
        %v1432 = vshrl.u32 %v1385, 16
        %v1434 = vrot.slane %v1432, 7
        %v1435 = vshll.u32 %v1385, 16
        %v1437 = vor.u32 %v1434, %v1435
        %v1439 = vshrl.u32 %v1386, 16
        %v1441 = vrot.slane %v1439, 7
        %v1442 = vshll.u32 %v1386, 16
        %v1444 = vor.u32 %v1441, %v1442
        %v1446 = vshrl.u32 %v1387, 16
        %v1448 = vrot.slane %v1446, 7
        %v1449 = vshll.u32 %v1387, 16
        %v1451 = vor.u32 %v1448, %v1449
        %v1453 = vshrl.u32 %v1388, 16
        %v1455 = vrot.slane %v1453, 7
        %v1456 = vshll.u32 %v1388, 16
        %v1458 = vor.u32 %v1455, %v1456
        %v1460 = vshrl.u32 %v1389, 16
        %v1462 = vrot.slane %v1460, 7
        %v1463 = vshll.u32 %v1389, 16
        %v1465 = vor.u32 %v1462, %v1463
        %v1467 = vshrl.u32 %v1390, 16
        %v1469 = vrot.slane %v1467, 7
        %v1470 = vshll.u32 %v1390, 16
        %v1472 = vor.u32 %v1469, %v1470
        %v1474 = vshrl.u32 %v1391, 16
        %v1476 = vrot.slane %v1474, 7
        %v1477 = vshll.u32 %v1391, 16
        %v1479 = vor.u32 %v1476, %v1477
        %v1481 = vshrl.u32 %v1392, 16
        %v1483 = vrot.slane %v1481, 7
        %v1484 = vshll.u32 %v1392, 16
        %v1486 = vor.u32 %v1483, %v1484
        %v1488 = vshrl.u32 %v1393, 16
        %v1490 = vrot.slane %v1488, 7
        %v1491 = vshll.u32 %v1393, 16
        %v1493 = vor.u32 %v1490, %v1491
        %v1495 = vshrl.u32 %v1394, 16
        %v1497 = vrot.slane %v1495, 7
        %v1498 = vshll.u32 %v1394, 16
        %v1500 = vor.u32 %v1497, %v1498
        %v1502 = vshrl.u32 %v1395, 16
        %v1504 = vrot.slane %v1502, 7
        %v1505 = vshll.u32 %v1395, 16
        %v1507 = vor.u32 %v1504, %v1505
        %v1540 = vsel %vm491, 0, %v1402
        %v1541 = vsel %vm491, 0, %v1409
        %v1542 = vsel %vm491, 0, %v1416
        %v1543 = vsel %vm491, 0, %v1423
        %v1544 = vsel %vm491, 0, %v1430
        %v1545 = vsel %vm491, 0, %v1437
        %v1546 = vsel %vm491, 0, %v1444
        %v1547 = vsel %vm491, 0, %v1451
        %v1548 = vsel %vm491, 0, %v1458
        %v1549 = vsel %vm491, 0, %v1465
        %v1550 = vsel %vm491, 0, %v1472
        %v1551 = vsel %vm491, 0, %v1479
        %v1552 = vsel %vm491, 0, %v1486
        %v1553 = vsel %vm491, 0, %v1493
        %v1554 = vsel %vm491, 0, %v1500
        %v1555 = vsel %vm491, 0, %v1507
        %v1556 = vsel %vm491, %v1399, 0
        %v1557 = vsel %vm491, %v1406, 0
        %v1558 = vsel %vm491, %v1413, 0
        %v1559 = vsel %vm491, %v1420, 0
        %v1560 = vsel %vm491, %v1427, 0
        %v1561 = vsel %vm491, %v1434, 0
        %v1562 = vsel %vm491, %v1441, 0
        %v1563 = vsel %vm491, %v1448, 0
        %v1564 = vsel %vm491, %v1455, 0
        %v1565 = vsel %vm491, %v1462, 0
        %v1566 = vsel %vm491, %v1469, 0
        %v1567 = vsel %vm491, %v1476, 0
        %v1568 = vsel %vm491, %v1483, 0
        %v1569 = vsel %vm491, %v1490, 0
        %v1570 = vsel %vm491, %v1497, 0
        %v1571 = vsel %vm491, %v1504, 0
        %v1573 = vshrl.u32 %v1540, 16
        %v1575 = vshll.u32 %v1540, 16
        %v1577 = vrot.slane %v1575, 1
        %v1578 = vor.u32 %v1573, %v1577
        %v1580 = vshll.u32 %v1556, 16
        %v1582 = vrot.slane %v1580, 1
        %v1583 = vsel %vm526, %v1578, %v1582
        %v1585 = vshrl.u32 %v1541, 16
        %v1587 = vshll.u32 %v1541, 16
        %v1589 = vrot.slane %v1587, 1
        %v1590 = vor.u32 %v1585, %v1589
        %v1592 = vshll.u32 %v1557, 16
        %v1594 = vrot.slane %v1592, 1
        %v1595 = vsel %vm526, %v1590, %v1594
        %v1597 = vshrl.u32 %v1542, 16
        %v1599 = vshll.u32 %v1542, 16
        %v1601 = vrot.slane %v1599, 1
        %v1602 = vor.u32 %v1597, %v1601
        %v1604 = vshll.u32 %v1558, 16
        %v1606 = vrot.slane %v1604, 1
        %v1607 = vsel %vm526, %v1602, %v1606
        %v1609 = vshrl.u32 %v1543, 16
        %v1611 = vshll.u32 %v1543, 16
        %v1613 = vrot.slane %v1611, 1
        %v1614 = vor.u32 %v1609, %v1613
        %v1616 = vshll.u32 %v1559, 16
        %v1618 = vrot.slane %v1616, 1
        %v1619 = vsel %vm526, %v1614, %v1618
        %v1621 = vshrl.u32 %v1544, 16
        %v1623 = vshll.u32 %v1544, 16
        %v1625 = vrot.slane %v1623, 1
        %v1626 = vor.u32 %v1621, %v1625
        %v1628 = vshll.u32 %v1560, 16
        %v1630 = vrot.slane %v1628, 1
        %v1631 = vsel %vm526, %v1626, %v1630
        %v1633 = vshrl.u32 %v1545, 16
        %v1635 = vshll.u32 %v1545, 16
        %v1637 = vrot.slane %v1635, 1
        %v1638 = vor.u32 %v1633, %v1637
        %v1640 = vshll.u32 %v1561, 16
        %v1642 = vrot.slane %v1640, 1
        %v1643 = vsel %vm526, %v1638, %v1642
        %v1645 = vshrl.u32 %v1546, 16
        %v1647 = vshll.u32 %v1546, 16
        %v1649 = vrot.slane %v1647, 1
        %v1650 = vor.u32 %v1645, %v1649
        %v1652 = vshll.u32 %v1562, 16
        %v1654 = vrot.slane %v1652, 1
        %v1655 = vsel %vm526, %v1650, %v1654
        %v1657 = vshrl.u32 %v1547, 16
        %v1659 = vshll.u32 %v1547, 16
        %v1661 = vrot.slane %v1659, 1
        %v1662 = vor.u32 %v1657, %v1661
        %v1664 = vshll.u32 %v1563, 16
        %v1666 = vrot.slane %v1664, 1
        %v1667 = vsel %vm526, %v1662, %v1666
        %v1669 = vshrl.u32 %v1548, 16
        %v1671 = vshll.u32 %v1548, 16
        %v1673 = vrot.slane %v1671, 1
        %v1674 = vor.u32 %v1669, %v1673
        %v1676 = vshll.u32 %v1564, 16
        %v1678 = vrot.slane %v1676, 1
        %v1679 = vsel %vm526, %v1674, %v1678
        %v1681 = vshrl.u32 %v1549, 16
        %v1683 = vshll.u32 %v1549, 16
        %v1685 = vrot.slane %v1683, 1
        %v1686 = vor.u32 %v1681, %v1685
        %v1688 = vshll.u32 %v1565, 16
        %v1690 = vrot.slane %v1688, 1
        %v1691 = vsel %vm526, %v1686, %v1690
        %v1693 = vshrl.u32 %v1550, 16
        %v1695 = vshll.u32 %v1550, 16
        %v1697 = vrot.slane %v1695, 1
        %v1698 = vor.u32 %v1693, %v1697
        %v1700 = vshll.u32 %v1566, 16
        %v1702 = vrot.slane %v1700, 1
        %v1703 = vsel %vm526, %v1698, %v1702
        %v1705 = vshrl.u32 %v1551, 16
        %v1707 = vshll.u32 %v1551, 16
        %v1709 = vrot.slane %v1707, 1
        %v1710 = vor.u32 %v1705, %v1709
        %v1712 = vshll.u32 %v1567, 16
        %v1714 = vrot.slane %v1712, 1
        %v1715 = vsel %vm526, %v1710, %v1714
        %v1717 = vshrl.u32 %v1552, 16
        %v1719 = vshll.u32 %v1552, 16
        %v1721 = vrot.slane %v1719, 1
        %v1722 = vor.u32 %v1717, %v1721
        %v1724 = vshll.u32 %v1568, 16
        %v1726 = vrot.slane %v1724, 1
        %v1727 = vsel %vm526, %v1722, %v1726
        %v1729 = vshrl.u32 %v1553, 16
        %v1731 = vshll.u32 %v1553, 16
        %v1733 = vrot.slane %v1731, 1
        %v1734 = vor.u32 %v1729, %v1733
        %v1736 = vshll.u32 %v1569, 16
        %v1738 = vrot.slane %v1736, 1
        %v1739 = vsel %vm526, %v1734, %v1738
        %v1741 = vshrl.u32 %v1554, 16
        %v1743 = vshll.u32 %v1554, 16
        %v1745 = vrot.slane %v1743, 1
        %v1746 = vor.u32 %v1741, %v1745
        %v1748 = vshll.u32 %v1570, 16
        %v1750 = vrot.slane %v1748, 1
        %v1751 = vsel %vm526, %v1746, %v1750
        %v1753 = vshrl.u32 %v1555, 16
        %v1755 = vshll.u32 %v1555, 16
        %v1757 = vrot.slane %v1755, 1
        %v1758 = vor.u32 %v1753, %v1757
        %v1760 = vshll.u32 %v1571, 16
        %v1762 = vrot.slane %v1760, 1
        %v1763 = vsel %vm526, %v1758, %v1762
        %1764 = vrot.lane.b32.xlu0 %v538, 8
        %v1765 = vpop.permute.xlu0 %1764
        %1766 = vrot.lane.b32.xlu0 %v1583, 8
        %v1767 = vpop.permute.xlu0 %1766
        %1768 = vrot.lane.b32.xlu0 %v1595, 8
        %v1769 = vpop.permute.xlu0 %1768
        %1770 = vrot.lane.b32.xlu0 %v1607, 8
        %v1771 = vpop.permute.xlu0 %1770
        %1772 = vrot.lane.b32.xlu0 %v1619, 8
        %v1773 = vpop.permute.xlu0 %1772
        %1774 = vrot.lane.b32.xlu0 %v1631, 8
        %v1775 = vpop.permute.xlu0 %1774
        %1776 = vrot.lane.b32.xlu0 %v1643, 8
        %v1777 = vpop.permute.xlu0 %1776
        %1778 = vrot.lane.b32.xlu0 %v1655, 8
        %v1779 = vpop.permute.xlu0 %1778
        %1780 = vrot.lane.b32.xlu0 %v1667, 8
        %v1781 = vpop.permute.xlu0 %1780
        %1782 = vrot.lane.b32.xlu0 %v1679, 8
        %v1783 = vpop.permute.xlu0 %1782
        %1784 = vrot.lane.b32.xlu0 %v1691, 8
        %v1785 = vpop.permute.xlu0 %1784
        %1786 = vrot.lane.b32.xlu0 %v1703, 8
        %v1787 = vpop.permute.xlu0 %1786
        %1788 = vrot.lane.b32.xlu0 %v1715, 8
        %v1789 = vpop.permute.xlu0 %1788
        %1790 = vrot.lane.b32.xlu0 %v1727, 8
        %v1791 = vpop.permute.xlu0 %1790
        %1792 = vrot.lane.b32.xlu0 %v1739, 8
        %v1793 = vpop.permute.xlu0 %1792
        %1794 = vrot.lane.b32.xlu0 %v1751, 8
        %v1795 = vpop.permute.xlu0 %1794
        %1796 = vrot.lane.b32.xlu0 %v1763, 8
        %v1797 = vpop.permute.xlu0 %1796
        %v1830 = vrot.slane %v1540, 1
        %v1831 = vrot.slane %v1556, 1
        %v1832 = vsel %vm799, %v1830, %v1831
        %v1833 = vrot.slane %v1541, 1
        %v1834 = vrot.slane %v1557, 1
        %v1835 = vsel %vm799, %v1833, %v1834
        %v1836 = vrot.slane %v1542, 1
        %v1837 = vrot.slane %v1558, 1
        %v1838 = vsel %vm799, %v1836, %v1837
        %v1839 = vrot.slane %v1543, 1
        %v1840 = vrot.slane %v1559, 1
        %v1841 = vsel %vm799, %v1839, %v1840
        %v1842 = vrot.slane %v1544, 1
        %v1843 = vrot.slane %v1560, 1
        %v1844 = vsel %vm799, %v1842, %v1843
        %v1845 = vrot.slane %v1545, 1
        %v1846 = vrot.slane %v1561, 1
        %v1847 = vsel %vm799, %v1845, %v1846
        %v1848 = vrot.slane %v1546, 1
        %v1849 = vrot.slane %v1562, 1
        %v1850 = vsel %vm799, %v1848, %v1849
        %v1851 = vrot.slane %v1547, 1
        %v1852 = vrot.slane %v1563, 1
        %v1853 = vsel %vm799, %v1851, %v1852
        %v1854 = vrot.slane %v1548, 1
        %v1855 = vrot.slane %v1564, 1
        %v1856 = vsel %vm799, %v1854, %v1855
        %v1857 = vrot.slane %v1549, 1
        %v1858 = vrot.slane %v1565, 1
        %v1859 = vsel %vm799, %v1857, %v1858
        %v1860 = vrot.slane %v1550, 1
        %v1861 = vrot.slane %v1566, 1
        %v1862 = vsel %vm799, %v1860, %v1861
        %v1863 = vrot.slane %v1551, 1
        %v1864 = vrot.slane %v1567, 1
        %v1865 = vsel %vm799, %v1863, %v1864
        %v1866 = vrot.slane %v1552, 1
        %v1867 = vrot.slane %v1568, 1
        %v1868 = vsel %vm799, %v1866, %v1867
        %v1869 = vrot.slane %v1553, 1
        %v1870 = vrot.slane %v1569, 1
        %v1871 = vsel %vm799, %v1869, %v1870
        %v1872 = vrot.slane %v1554, 1
        %v1873 = vrot.slane %v1570, 1
        %v1874 = vsel %vm799, %v1872, %v1873
        %v1875 = vrot.slane %v1555, 1
        %v1876 = vrot.slane %v1571, 1
        %v1877 = vsel %vm799, %v1875, %v1876
        %1878 = vrot.lane.b32.xlu0 %v802, 16
        %v1879 = vpop.permute.xlu0 %1878
        %1880 = vrot.lane.b32.xlu0 %v1832, 16
        %v1881 = vpop.permute.xlu0 %1880
        %1882 = vrot.lane.b32.xlu0 %v1835, 16
        %v1883 = vpop.permute.xlu0 %1882
        %1884 = vrot.lane.b32.xlu0 %v1838, 16
        %v1885 = vpop.permute.xlu0 %1884
        %1886 = vrot.lane.b32.xlu0 %v1841, 16
        %v1887 = vpop.permute.xlu0 %1886
        %1888 = vrot.lane.b32.xlu0 %v1844, 16
        %v1889 = vpop.permute.xlu0 %1888
        %1890 = vrot.lane.b32.xlu0 %v1847, 16
        %v1891 = vpop.permute.xlu0 %1890
        %1892 = vrot.lane.b32.xlu0 %v1850, 16
        %v1893 = vpop.permute.xlu0 %1892
        %1894 = vrot.lane.b32.xlu0 %v1853, 16
        %v1895 = vpop.permute.xlu0 %1894
        %1896 = vrot.lane.b32.xlu0 %v1856, 16
        %v1897 = vpop.permute.xlu0 %1896
        %1898 = vrot.lane.b32.xlu0 %v1859, 16
        %v1899 = vpop.permute.xlu0 %1898
        %1900 = vrot.lane.b32.xlu0 %v1862, 16
        %v1901 = vpop.permute.xlu0 %1900
        %1902 = vrot.lane.b32.xlu0 %v1865, 16
        %v1903 = vpop.permute.xlu0 %1902
        %1904 = vrot.lane.b32.xlu0 %v1868, 16
        %v1905 = vpop.permute.xlu0 %1904
        %1906 = vrot.lane.b32.xlu0 %v1871, 16
        %v1907 = vpop.permute.xlu0 %1906
        %1908 = vrot.lane.b32.xlu0 %v1874, 16
        %v1909 = vpop.permute.xlu0 %1908
        %1910 = vrot.lane.b32.xlu0 %v1877, 16
        %v1911 = vpop.permute.xlu0 %1910
        %v1913 = vsel %vm920, %v492, %v1765
        %v1915 = vsel %vm920, %v1540, %v1767
        %v1917 = vsel %vm920, %v1541, %v1769
        %v1919 = vsel %vm920, %v1542, %v1771
        %v1921 = vsel %vm920, %v1543, %v1773
        %v1923 = vsel %vm920, %v1544, %v1775
        %v1925 = vsel %vm920, %v1545, %v1777
        %v1927 = vsel %vm920, %v1546, %v1779
        %v1929 = vsel %vm920, %v1547, %v1781
        %v1931 = vsel %vm920, %v1548, %v1783
        %v1933 = vsel %vm920, %v1549, %v1785
        %v1935 = vsel %vm920, %v1550, %v1787
        %v1937 = vsel %vm920, %v1551, %v1789
        %v1939 = vsel %vm920, %v1552, %v1791
        %v1941 = vsel %vm920, %v1553, %v1793
        %v1943 = vsel %vm920, %v1554, %v1795
        %v1945 = vsel %vm920, %v1555, %v1797
        %vm1946 = vcmask 130048
        %v1948 = vsel %vm1946, %v1913, %v1879
        %v1950 = vsel %vm1946, %v1915, %v1881
        %v1952 = vsel %vm1946, %v1917, %v1883
        %v1954 = vsel %vm1946, %v1919, %v1885
        %v1956 = vsel %vm1946, %v1921, %v1887
        %v1958 = vsel %vm1946, %v1923, %v1889
        %v1960 = vsel %vm1946, %v1925, %v1891
        %v1962 = vsel %vm1946, %v1927, %v1893
        %v1964 = vsel %vm1946, %v1929, %v1895
        %v1966 = vsel %vm1946, %v1931, %v1897
        %v1968 = vsel %vm1946, %v1933, %v1899
        %v1970 = vsel %vm1946, %v1935, %v1901
        %v1972 = vsel %vm1946, %v1937, %v1903
        %v1974 = vsel %vm1946, %v1939, %v1905
        %v1976 = vsel %vm1946, %v1941, %v1907
        %v1978 = vsel %vm1946, %v1943, %v1909
        %v1980 = vsel %vm1946, %v1945, %v1911
        %1997 = vrot.lane.b32.xlu0 %v1950, 24
        %v1998 = vpop.permute.xlu0 %1997
        %1999 = vrot.lane.b32.xlu0 %v1952, 24
        %v2000 = vpop.permute.xlu0 %1999
        %2001 = vrot.lane.b32.xlu0 %v1954, 24
        %v2002 = vpop.permute.xlu0 %2001
        %2003 = vrot.lane.b32.xlu0 %v1956, 24
        %v2004 = vpop.permute.xlu0 %2003
        %2005 = vrot.lane.b32.xlu0 %v1958, 24
        %v2006 = vpop.permute.xlu0 %2005
        %2007 = vrot.lane.b32.xlu0 %v1960, 24
        %v2008 = vpop.permute.xlu0 %2007
        %2009 = vrot.lane.b32.xlu0 %v1962, 24
        %v2010 = vpop.permute.xlu0 %2009
        %2011 = vrot.lane.b32.xlu0 %v1964, 24
        %v2012 = vpop.permute.xlu0 %2011
        %2013 = vrot.lane.b32.xlu0 %v1966, 24
        %v2014 = vpop.permute.xlu0 %2013
        %2015 = vrot.lane.b32.xlu0 %v1968, 24
        %v2016 = vpop.permute.xlu0 %2015
        %2017 = vrot.lane.b32.xlu0 %v1970, 24
        %v2018 = vpop.permute.xlu0 %2017
        %2019 = vrot.lane.b32.xlu0 %v1972, 24
        %v2020 = vpop.permute.xlu0 %2019
        %2021 = vrot.lane.b32.xlu0 %v1974, 24
        %v2022 = vpop.permute.xlu0 %2021
        %2023 = vrot.lane.b32.xlu0 %v1976, 24
        %v2024 = vpop.permute.xlu0 %2023
        %2025 = vrot.lane.b32.xlu0 %v1978, 24
        %v2026 = vpop.permute.xlu0 %2025
        %2027 = vrot.lane.b32.xlu0 %v1980, 24
        %v2028 = vpop.permute.xlu0 %2027
        %2030 = vrot.lane.b32.xlu0 %v1952, 48
        %v2031 = vpop.permute.xlu0 %2030
        %2032 = vrot.lane.b32.xlu0 %v1954, 48
        %v2033 = vpop.permute.xlu0 %2032
        %2034 = vrot.lane.b32.xlu0 %v1956, 48
        %v2035 = vpop.permute.xlu0 %2034
        %2036 = vrot.lane.b32.xlu0 %v1958, 48
        %v2037 = vpop.permute.xlu0 %2036
        %2038 = vrot.lane.b32.xlu0 %v1960, 48
        %v2039 = vpop.permute.xlu0 %2038
        %2040 = vrot.lane.b32.xlu0 %v1962, 48
        %v2041 = vpop.permute.xlu0 %2040
        %2042 = vrot.lane.b32.xlu0 %v1964, 48
        %v2043 = vpop.permute.xlu0 %2042
        %2044 = vrot.lane.b32.xlu0 %v1966, 48
        %v2045 = vpop.permute.xlu0 %2044
        %2046 = vrot.lane.b32.xlu0 %v1968, 48
        %v2047 = vpop.permute.xlu0 %2046
        %2048 = vrot.lane.b32.xlu0 %v1970, 48
        %v2049 = vpop.permute.xlu0 %2048
        %2050 = vrot.lane.b32.xlu0 %v1972, 48
        %v2051 = vpop.permute.xlu0 %2050
        %2052 = vrot.lane.b32.xlu0 %v1974, 48
        %v2053 = vpop.permute.xlu0 %2052
        %2054 = vrot.lane.b32.xlu0 %v1976, 48
        %v2055 = vpop.permute.xlu0 %2054
        %2056 = vrot.lane.b32.xlu0 %v1978, 48
        %v2057 = vpop.permute.xlu0 %2056
        %2058 = vrot.lane.b32.xlu0 %v1980, 48
        %v2059 = vpop.permute.xlu0 %2058
        %2060 = vrot.lane.b32.xlu0 %v1948, 48
        %v2061 = vpop.permute.xlu0 %2060
        %v2063 = vsel %vm1069, %v1948, %v1998
        %v2065 = vsel %vm1069, %v1950, %v2000
        %v2067 = vsel %vm1069, %v1952, %v2002
        %v2069 = vsel %vm1069, %v1954, %v2004
        %v2071 = vsel %vm1069, %v1956, %v2006
        %v2073 = vsel %vm1069, %v1958, %v2008
        %v2075 = vsel %vm1069, %v1960, %v2010
        %v2077 = vsel %vm1069, %v1962, %v2012
        %v2079 = vsel %vm1069, %v1964, %v2014
        %v2081 = vsel %vm1069, %v1966, %v2016
        %v2083 = vsel %vm1069, %v1968, %v2018
        %v2085 = vsel %vm1069, %v1970, %v2020
        %v2087 = vsel %vm1069, %v1972, %v2022
        %v2089 = vsel %vm1069, %v1974, %v2024
        %v2091 = vsel %vm1069, %v1976, %v2026
        %v2093 = vsel %vm1069, %v1978, %v2028
        %vm2094 = vcmask 392192
        %v2096 = vsel %vm2094, %v2063, %v2031
        %v2098 = vsel %vm2094, %v2065, %v2033
        %v2100 = vsel %vm2094, %v2067, %v2035
        %v2102 = vsel %vm2094, %v2069, %v2037
        %v2104 = vsel %vm2094, %v2071, %v2039
        %v2106 = vsel %vm2094, %v2073, %v2041
        %v2108 = vsel %vm2094, %v2075, %v2043
        %v2110 = vsel %vm2094, %v2077, %v2045
        %v2112 = vsel %vm2094, %v2079, %v2047
        %v2114 = vsel %vm2094, %v2081, %v2049
        %v2116 = vsel %vm2094, %v2083, %v2051
        %v2118 = vsel %vm2094, %v2085, %v2053
        %v2120 = vsel %vm2094, %v2087, %v2055
        %v2122 = vsel %vm2094, %v2089, %v2057
        %v2124 = vsel %vm2094, %v2091, %v2059
        %v2126 = vsel %vm2094, %v2093, %v2061
        %v2127 = vld [vmem:[%s3] sm:$0xf]
        %v2128 = vld [vmem:[%s4] sm:$0xff]
        %2130 = vset.pattern.permute.xlu0 0
        %2131 = vperm.xlu0 %2130, %v2128
        %v2132 = vpop.permute.xlu0 %2131
        %vm2134 = vcmask 588800
        %v2136 = vsel %vm2134, %v2127, 0
        %v2138 = vsel %vm2134, %v2096, 0
        %v2140 = vsel %vm2134, %v2098, 0
        %v2142 = vsel %vm2134, %v2100, 0
        %v2144 = vsel %vm2134, %v2102, 0
        %v2146 = vsel %vm2134, %v2104, 0
        %v2148 = vsel %vm2134, %v2106, 0
        %v2150 = vsel %vm2134, %v2108, 0
        %v2152 = vsel %vm2134, %v2110, 0
        %v2154 = vsel %vm2134, %v2112, 0
        %v2156 = vsel %vm2134, %v2114, 0
        %v2158 = vsel %vm2134, %v2116, 0
        %v2160 = vsel %vm2134, %v2118, 0
        %v2162 = vsel %vm2134, %v2120, 0
        %v2164 = vsel %vm2134, %v2122, 0
        %v2166 = vsel %vm2134, %v2124, 0
        %v2168 = vsel %vm2134, %v2126, 0
        %2170 = vmatpush.bf16.xpose.msra.mxu0 %v2152
        %2171 = vmatpush.bf16.xpose.msra.mxu0 %v2150
        %2172 = vmatpush.bf16.xpose.msra.mxu0 %v2148
        %2173 = vmatpush.bf16.xpose.msra.mxu0 %v2146
        %2174 = vmatpush.bf16.xpose.msra.mxu0 %v2144
        %2175 = vmatpush.bf16.xpose.msra.mxu0 %v2142
        %2176 = vmatpush.bf16.xpose.msra.mxu0 %v2140
        %2177 = vmatpush.bf16.xpose.msra.mxu0 %v2138
        %2178 = vmatmul.bf16.gmra.mxu0 %v2136
        %v2179 = vpop.f32.mrf.mxu0
        %v2180 = vadd.f32 %v2132, %v2179
        %v2181 = vpop.f32.mrf.mxu0
        %2182 = vdwg.mxu0
        %2183 = vmatpush.bf16.xpose.msra.mxu0 %v2168
        %2184 = vmatpush.bf16.xpose.msra.mxu0 %v2166
        %2185 = vmatpush.bf16.xpose.msra.mxu0 %v2164
        %2186 = vmatpush.bf16.xpose.msra.mxu0 %v2162
        %2187 = vmatpush.bf16.xpose.msra.mxu0 %v2160
        %2188 = vmatpush.bf16.xpose.msra.mxu0 %v2158
        %2189 = vmatpush.bf16.xpose.msra.mxu0 %v2156
        %2190 = vmatpush.bf16.xpose.msra.mxu0 %v2154
        %2191 = vmatmul.bf16.gmra.mxu0 %v2136
        %v2192 = vpop.f32.mrf.mxu0
        %v2193 = vadd.f32 %v2132, %v2192
        %v2194 = vpop.f32.mrf.mxu0
        %2195 = vdwg.mxu0
        %v2196 = vmax.f32 %v2180, 0.0
        %v2197 = vmax.f32 %v2193, 0.0
        %2198 = vst [vmem:[%s217] sm:$0xff] %v2196
        %2199 = vst [vmem:[%s217 + $0x8] sm:$0xff] %v2197
        %s2200 = sand.u32 %s137, 1
        %s2201 = scalar_lea.sflag [#allocation3], %s2200
        %s2202 = sand.u32 %s137, 1
        %s2203 = smul.addr %s2202, 16
        %s2204 = scalar_lea.vmem [#allocation2], %s2203
        // Predicated region
        $region41: #{tpu_custom_call.1} parent=39 // pred_check
          %p2205 = pneg %p147
        $region42: #{tpu_custom_call.1} parent=39 // pred_check_branch
          %2207 = sbr.rel (%p2205) target = $region44
        $region43: #{tpu_custom_call.1} parent=39 // pred_region
          %2209 = vsyncadd %s2201, 0
          %s2210 = smul.addr %s19, 2
          %s2211 = smul.addr %s2210, 8
          %s2212 = scalar_lea.hbm %s5, %s2211
          %s2214 = sshll.u32 %s2204, 4
          %s2215 = int_to_ptr.vmem [resolvable:$true] %s2214
          %s2216 = sshll.u32 %s2212, 4
          %s2217 = int_to_ptr.hbm [resolvable:$true] %s2216
          %2219 = dma.vmem_to_hbm [thread:$0]  %s2215, 256, %s2217, %s2201
        $region44: #{tpu_custom_call.1} parent=39 // pred_fallthru
          _
      $region40: #{tpu_custom_call.1} parent=5 // pred_fallthru
        _
      %p2220 = scmp.le.s32.totalorder 2, %s14
      // Predicated region
      $region45: #{tpu_custom_call.1} parent=5 // pred_check
        %p2221 = pneg %p2220
      $region46: #{tpu_custom_call.1} parent=5 // pred_check_branch
        %2223 = sbr.rel (%p2221) target = $region48
      $region47: #{tpu_custom_call.1} parent=5 // pred_region
        %s2224 = ssub.s32 %s14, 2
        // Predicated region
        $region49: #{tpu_custom_call.1} parent=47 // pred_check
          %p2225 = pneg %p153
        $region50: #{tpu_custom_call.1} parent=47 // pred_check_branch
          %2227 = sbr.rel (%p2225) target = $region52
        $region51: #{tpu_custom_call.1} parent=47 // pred_region
          %s2228 = sand.u32 %s138, 1
          %s2229 = scalar_lea.sflag [#allocation3], %s2228
          %s2230 = sand.u32 %s138, 1
          %s2231 = smul.addr %s2230, 16
          %s2232 = scalar_lea.vmem [#allocation2], %s2231
          %2234 = dma.done %s2229, 256
        $region52: #{tpu_custom_call.1} parent=47 // pred_fallthru
          _
      $region48: #{tpu_custom_call.1} parent=5 // pred_fallthru
        _
    $region6: #{tpu_custom_call.1} parent=1 // loop_footer
      %s18 = sadd.s32 1, %s14
    $region7: #{tpu_custom_call.1} parent=1 // loop_footer_branch
      %13 = sbr.rel target = $region3
    $region8: #{tpu_custom_call.1} parent=1 // loop_exit
      _
    %2235 = vsyncpa [#allocation3], 1
    %s2236 = scalar_lea.sflag [#allocation3], 1
    %2237 = vsyncpa %s2236, 1

</llo_original>
